<compile_context>
chip_gen: v5e
topology: v5e:2x2
jax: 0.10.0
libtpu: 0.0.40
codegen_flags: <defaults>
</compile_context>

<pallas_src>
import functools

import jax
import jax.numpy as jnp
import numpy as np
from jax.experimental import pallas as pl
from jax.experimental.pallas import tpu as pltpu


# -----------------------------------------------------------------------------
# One-time cached probes.  They never wrap the real kernel, so its real failures
# (e.g. RESOURCE_EXHAUSTED) are never swallowed.
# -----------------------------------------------------------------------------
@functools.lru_cache(maxsize=None)
def _roll_mode():
    """pltpu.roll lane-rotation convention: "np" (== np.roll), "rev", or "fallback"."""
    def k(x_ref, o_ref):
        o_ref[...] = pltpu.roll(x_ref[...], 1, axis=1)

    xa = np.tile(np.arange(128, dtype=np.float32)[None, :], (8, 1))
    try:
        out = np.asarray(
            pl.pallas_call(k, out_shape=jax.ShapeDtypeStruct((8, 128), jnp.float32))(
                jnp.asarray(xa)))
        if np.array_equal(out, np.roll(xa, 1, axis=1)):
            return "np"
        if np.array_equal(out, np.roll(xa, -1, axis=1)):
            return "rev"
    except Exception:
        pass
    return "fallback"


@functools.lru_cache(maxsize=None)
def _buffered_one_supported():
    """Build-time check: does this JAX/Mosaic accept pipeline_mode=pl.Buffered(1)?"""
    def k(c_ref, x_ref, o_ref):
        o_ref[...] = x_ref[...] + c_ref[...]

    try:
        const_spec = pl.BlockSpec((8, 128), lambda i: (0, 0),
                                  pipeline_mode=pl.Buffered(1))
        call = pl.pallas_call(
            k,
            out_shape=jax.ShapeDtypeStruct((16, 128), jnp.float32),
            grid=(2,),
            in_specs=[const_spec, pl.BlockSpec((8, 128), lambda i: (i, 0))],
            out_specs=pl.BlockSpec((8, 128), lambda i: (i, 0)),
        )
        jax.jit(call).lower(
            jax.ShapeDtypeStruct((8, 128), jnp.float32),
            jax.ShapeDtypeStruct((16, 128), jnp.float32)).compile()
        return True
    except Exception:
        return False


def _lane_roll(z, shift, size, mode):
    """Roll z along its last (lane) axis by `shift` (np.roll convention)."""
    shift = shift % size
    if shift == 0:
        return z
    if mode == "np":
        return pltpu.roll(z, shift, axis=1)
    if mode == "rev":
        return pltpu.roll(z, size - shift, axis=1)
    return jnp.roll(z, shift, axis=1)  # static shift -> lane slices + concat


# -----------------------------------------------------------------------------
# Pallas kernel: one batch sample per grid step.
# -----------------------------------------------------------------------------
def _upsample_blend_kernel(x_ref, skip_ref, wwt_ref, whb_ref, scale_ref, shift_ref,
                           wconv_ref, mask_ref, out_ref, zflat_ref,
                           *, C, Hin, Hs, Ws, roll_mode):
    Ls = Hs * Ws
    Co = wconv_ref.shape[1]
    mm_dtype = wwt_ref.dtype           # bf16 for MXU peak (v6e/v7x), f32 for exact path

    # (1) Separable bilinear upsample (PyTorch align_corners=False semantics).
    #     W-pass: ONE lane-dim matmul  (C*Hin, Win) @ (Win, Ws) -> (C*Hin, Ws), f32 acc.
    xw = jnp.dot(x_ref[0], wwt_ref[...], preferred_element_type=jnp.float32)
    #     H-pass: channel-batched matmul (C, Hs, Hin) @ (C, Hin, Ws) -> (C, Hs, Ws).
    #     The (C*Hin, Ws) -> (C, Hin, Ws) reshape only splits leading dims (free).
    xw3 = xw.reshape(C, Hin, Ws).astype(mm_dtype)
    up3 = jax.lax.dot_general(
        whb_ref[...], xw3,
        dimension_numbers=(((2,), (1,)), ((0,), (0,))),
        preferred_element_type=jnp.float32)                       # (C, Hs, Ws)

    # (2) Skip add + folded inference BatchNorm + ReLU (f32 VPU), written row-by-row
    #     into the lane-dense flattened (C, Hs*Ws) scratch layout used by the conv.
    skp = skip_ref[0].astype(jnp.float32)                         # (C, Ls)
    scale = scale_ref[...]
    shift = shift_ref[...]
    for h in range(Hs):
        sl = slice(h * Ws, (h + 1) * Ws)
        zflat_ref[:, sl] = jnp.maximum(
            (up3[:, h, :] + skp[:, sl]) * scale + shift, 0.0)
    z = zflat_ref[...]                                            # (C, Ls) f32

    # (3) 3x3 SAME conv as NINE accumulated channel-mixing matmuls.  Tap (kh, kw)
    #     reads the source pixel at flattened offset off = (kh-1)*Ws + (kw-1): an XLU
    #     lane rotation, with out-of-bounds (zero-pad) sources killed by a precomputed
    #     border mask.  Each tap is cast per-tap to the MXU dtype, consumed, discarded.
    acc = jnp.zeros((Co, Ls), jnp.float32)
    for kh in range(3):
        for kw in range(3):
            t = kh * 3 + kw
            off = (kh - 1) * Ws + (kw - 1)
            if off == 0:
                tap = z
            else:
                tap = _lane_roll(z, -off, Ls, roll_mode) * mask_ref[t:t + 1, :]
            acc = acc + jnp.dot(wconv_ref[t], tap.astype(mm_dtype),
                                preferred_element_type=jnp.float32)
    out_ref[0] = acc.astype(out_ref.dtype)


# -----------------------------------------------------------------------------
# pallas_call builder + wrapper
# -----------------------------------------------------------------------------
def _const_index_map(ndim):
    return lambda n: (0,) * ndim


def _vmem_limit_bytes(C, Hin, Win, Hs, Ws, mm_dtype, skip_dtype, out_dtype,
                      single_buffer_consts):
    """Derive the VMEM cap from the actual buffers instead of a hard-coded number."""
    isz = lambda dt: np.dtype(dt).itemsize
    Ls = Hs * Ws
    streamed = (C * Hin * Win * isz(mm_dtype)          # x block
                + C * Ls * isz(skip_dtype)             # skip block
                + C * Ls * isz(out_dtype))             # out block
    consts = ((Win * Ws + C * Hs * Hin + 9 * C * C) * isz(mm_dtype)
              + (2 * C + 9 * Ls) * 4)
    const_mult = 1 if single_buffer_consts else 2
    # f32 working set: W-pass out, H-pass out, z scratch, live tap, accumulator.
    work = (C * Hin * Ws + C * Hs * Ws + 3 * C * Ls) * 4
    need = 2 * streamed + const_mult * consts + work + (8 << 20)   # relayout/spill slack
    try:
        phys = int(pltpu.get_tpu_info().vmem_capacity_bytes)
    except Exception:
        phys = 64 << 20                                            # v7x per-core floor
    return int(min(max(need, 32 << 20), int(phys * 0.9)))


def _build_call(N, C, Hin, Win, Hs, Ws, mm_dtype, skip_dtype, out_dtype):
    Ls = Hs * Ws
    single_buffer_consts = _buffered_one_supported()
    const_kw = dict(pipeline_mode=pl.Buffered(1)) if single_buffer_consts else {}

    def const_spec(shape):
        # grid-invariant operand: constant index_map (fetched once per kernel call)
        return pl.BlockSpec(shape, _const_index_map(len(shape)), **const_kw)

    grid_spec = pltpu.PrefetchScalarGridSpec(
        num_scalar_prefetch=0,
        grid=(N,),
        in_specs=[
            pl.BlockSpec((1, C * Hin, Win), lambda n: (n, 0, 0)),   # x (W-pass layout)
            pl.BlockSpec((1, C, Ls), lambda n: (n, 0, 0)),          # skip (flattened)
            const_spec((Win, Ws)),                                  # Ww^T
            const_spec((C, Hs, Hin)),                               # Wh (channel-bcast)
            const_spec((C, 1)),                                     # BN scale (folded)
            const_spec((C, 1)),                                     # BN shift (folded)
            const_spec((9, C, C)),                                  # conv weight, tap-major
            const_spec((9, Ls)),                                    # tap border masks
        ],
        out_specs=pl.BlockSpec((1, C, Ls), lambda n: (n, 0, 0)),    # lane-dense output
        scratch_shapes=[pltpu.VMEM((C, Ls), jnp.float32)],          # flattened z
    )

    kernel = functools.partial(_upsample_blend_kernel, C=C, Hin=Hin, Hs=Hs, Ws=Ws,
                               roll_mode=_roll_mode())
    return pl.pallas_call(
        kernel,
        out_shape=jax.ShapeDtypeStruct((N, C, Ls), out_dtype),
        grid_spec=grid_spec,
        compiler_params=pltpu.CompilerParams(
            dimension_semantics=("parallel",),
            vmem_limit_bytes=_vmem_limit_bytes(
                C, Hin, Win, Hs, Ws, mm_dtype, skip_dtype, out_dtype,
                single_buffer_consts),
        ),
    )


def upsample_blend(x, skip, ww_t, wh_b, bn_scale, bn_shift, wconv_taps, tap_mask,
                   *, matmul_dtype=jnp.float32, out_dtype=None):
    """Forward of _UpsampleBlend (use_skip=True, use_bn=True (inference), k=3,
    separable=False)."""
    N, C, Hin, Win = x.shape
    _, _, Hs, Ws = skip.shape
    Ls = Hs * Ws
    if out_dtype is None:
        out_dtype = skip.dtype

    # Free views of contiguous NCHW; only MXU operands are cast, skip is upcast in-kernel.
    args = (
        x.reshape(N, C * Hin, Win).astype(matmul_dtype),
        skip.reshape(N, C, Ls),
        ww_t.astype(matmul_dtype),
        wh_b.astype(matmul_dtype),
        bn_scale.reshape(C, 1).astype(jnp.float32),
        bn_shift.reshape(C, 1).astype(jnp.float32),
        wconv_taps.astype(matmul_dtype),
        tap_mask.astype(jnp.float32),
    )
    call = _build_call(N, C, Hin, Win, Hs, Ws, matmul_dtype, skip.dtype, out_dtype)
    return call(*args).reshape(N, C, Hs, Ws)


# -----------------------------------------------------------------------------
# Host-side operator construction (PyTorch-exact bilinear, conv repack, masks)
# -----------------------------------------------------------------------------
def bilinear_matrix(out_size, in_size):
    """F.interpolate(mode='bilinear', align_corners=False) as an (out, in) matrix."""
    i = np.arange(out_size, dtype=np.float64)
    src = (i + 0.5) * (in_size / out_size) - 0.5
    src = np.maximum(src, 0.0)                      # PyTorch clamps source index >= 0
    i0 = np.minimum(np.floor(src).astype(np.int64), in_size - 1)
    i1 = np.minimum(i0 + 1, in_size - 1)
    frac = src - i0
    W = np.zeros((out_size, in_size), dtype=np.float32)
    W[np.arange(out_size), i0] += (1.0 - frac).astype(np.float32)
    W[np.arange(out_size), i1] += frac.astype(np.float32)
    return W


def upsample_operators(C, Hs, Ws, Hin, Win):
    """Separable operators: wh (Hs,Hin), ww (Ws,Win), Ww^T, channel-broadcast Wh."""
    wh = bilinear_matrix(Hs, Hin)
    ww = bilinear_matrix(Ws, Win)
    ww_t = jnp.asarray(ww.T)                                              # (Win, Ws)
    wh_b = jnp.asarray(np.ascontiguousarray(np.broadcast_to(wh, (C, Hs, Hin))))
    return wh, ww, ww_t, wh_b


def conv_tap_masks(Hs, Ws):
    """(9, Hs*Ws) f32 masks: 1 where the (kh,kw) tap's source pixel is in-bounds."""
    h = np.arange(Hs)[:, None]
    w = np.arange(Ws)[None, :]
    masks = []
    for kh in range(3):
        for kw in range(3):
            dh, dw = kh - 1, kw - 1
            m = (h + dh >= 0) & (h + dh < Hs) & (w + dw >= 0) & (w + dw < Ws)
            masks.append(m.astype(np.float32).reshape(-1))
    return jnp.asarray(np.stack(masks, axis=0))


def pack_conv_weight(wconv):
    """(Co, Ci, 3, 3) -> tap-major (9, Co, Ci) for the per-tap accumulated matmuls."""
    Co, Ci = wconv.shape[:2]
    return jnp.transpose(wconv, (2, 3, 0, 1)).reshape(9, Co, Ci)


if __name__ == "__main__":
    key = jax.random.PRNGKey(0)
    kx, ks, kw = jax.random.split(key, 3)

    N, C = 2, 4
    Hin = Win = 8
    Hs = Ws = 16

    x = jax.random.normal(kx, (N, C, Hin, Win), dtype=jnp.float32)
    skip = jax.random.normal(ks, (N, C, Hs, Ws), dtype=jnp.float32)

    # _BNReluConv(C, C, k=3): BatchNorm (inference, folded) + ReLU + Conv2d(3x3, no bias)
    eps = 1e-5
    gamma = 1.0 + 0.1 * jnp.arange(C, dtype=jnp.float32)
    beta = 0.01 * jnp.arange(C, dtype=jnp.float32)
    running_mean = 0.05 * jnp.arange(C, dtype=jnp.float32)
    running_var = 1.0 + 0.02 * jnp.arange(C, dtype=jnp.float32)
    inv_std = gamma / jnp.sqrt(running_var + eps)
    bn_scale = inv_std
    bn_shift = beta - running_mean * inv_std

    wconv = 0.1 * jax.random.normal(kw, (C, C, 3, 3), dtype=jnp.float32)
    wconv_taps = pack_conv_weight(wconv)

    wh, ww, ww_t, wh_b = upsample_operators(C, Hs, Ws, Hin, Win)
    tap_mask = conv_tap_masks(Hs, Ws)

    # ---- pure-JAX reference ----
    hp = jax.lax.Precision.HIGHEST
    up = jnp.einsum('Hh,nchw->ncHw', jnp.asarray(wh), x, precision=hp)
    up = jnp.einsum('Ww,ncHw->ncHW', jnp.asarray(ww), up, precision=hp)
    zr = jnp.maximum(
        (up + skip) * bn_scale.reshape(1, C, 1, 1) + bn_shift.reshape(1, C, 1, 1), 0.0)
    ref = jax.lax.conv_general_dilated(
        zr, wconv, window_strides=(1, 1), padding='SAME',
        dimension_numbers=('NCHW', 'OIHW', 'NCHW'), precision=hp)

    # f32 MXU operands + f32 I/O: tight check.
    out_f32 = jax.block_until_ready(
        upsample_blend(x, skip, ww_t, wh_b, bn_scale, bn_shift, wconv_taps, tap_mask,
                       matmul_dtype=jnp.float32, out_dtype=jnp.float32))
    np.testing.assert_allclose(np.asarray(out_f32), np.asarray(ref),
                               atol=1e-3, rtol=1e-3)

    # bf16 MXU operands + bf16 I/O (production setting: halves streamed HBM bytes).
    out_bf16 = jax.block_until_ready(
        upsample_blend(x.astype(jnp.bfloat16), skip.astype(jnp.bfloat16),
                       ww_t, wh_b, bn_scale, bn_shift, wconv_taps, tap_mask,
                       matmul_dtype=jnp.bfloat16, out_dtype=jnp.bfloat16))
    np.testing.assert_allclose(np.asarray(out_bf16.astype(jnp.float32)),
                               np.asarray(ref), atol=2.5e-1, rtol=2.5e-1)

    print("KERNEL_OK")
</pallas_src>

<mosaic_0001>
module attributes {stable_mosaic.version = 11 : i64} {
  func.func @k(%arg0: memref<8x128xf32, #tpu.memory_space<vmem>>, %arg1: memref<8x128xf32, #tpu.memory_space<vmem>>) attributes {dimension_semantics = [], scalar_prefetch = 0 : i64, scratch_operands = 0 : i64, tpu.core_type = #tpu.core_type<tc>} {
    %c0 = arith.constant 0 : index
    %c0_0 = arith.constant 0 : index
    %0 = vector.load %arg0[%c0, %c0_0] : memref<8x128xf32, #tpu.memory_space<vmem>>, vector<8x128xf32>
    %c1_i32 = arith.constant 1 : i32
    %1 = tpu.dynamic_rotate %0 by %c1_i32 dim 1 : vector<8x128xf32>, i32 -> vector<8x128xf32>
    %c0_1 = arith.constant 0 : index
    %c0_2 = arith.constant 0 : index
    %2 = vector.load %arg1[%c0_1, %c0_2] : memref<8x128xf32, #tpu.memory_space<vmem>>, vector<8x128xf32>
    tpu.vector_store %arg1[%c0_1, %c0_2], %1 {strides = array<i32>} : memref<8x128xf32, #tpu.memory_space<vmem>>, vector<8x128xf32>,
    return
  }
}

module attributes {stable_mosaic.version = 11 : i64} {
  func.func @_upsample_blend_kernel(%arg0: i32, %arg1: memref<1x32x8xf32, #tpu.memory_space<vmem>>, %arg2: memref<1x4x256xf32, #tpu.memory_space<vmem>>, %arg3: memref<8x16xf32, #tpu.memory_space<vmem>>, %arg4: memref<4x16x8xf32, #tpu.memory_space<vmem>>, %arg5: memref<4x1xf32, #tpu.memory_space<vmem>>, %arg6: memref<4x1xf32, #tpu.memory_space<vmem>>, %arg7: memref<9x4x4xf32, #tpu.memory_space<vmem>>, %arg8: memref<9x256xf32, #tpu.memory_space<vmem>>, %arg9: memref<1x4x256xf32, #tpu.memory_space<vmem>>, %arg10: memref<4x256xf32, #tpu.memory_space<vmem>>) attributes {dimension_semantics = [#tpu.dimension_semantics<parallel>], iteration_bounds = array<i64: 2>, scalar_prefetch = 0 : i64, scratch_operands = 1 : i64, tpu.core_type = #tpu.core_type<tc>, window_params = [{transform_indices = @transform_0, window_bounds = array<i64: 1, 32, 8>}, {transform_indices = @transform_1, window_bounds = array<i64: 1, 4, 256>}, {pipeline_mode = #tpu.pipeline_mode<synchronous>, transform_indices = @transform_2, window_bounds = array<i64: 8, 16>}, {pipeline_mode = #tpu.pipeline_mode<synchronous>, transform_indices = @transform_3, window_bounds = array<i64: 4, 16, 8>}, {pipeline_mode = #tpu.pipeline_mode<synchronous>, transform_indices = @transform_4, window_bounds = array<i64: 4, 1>}, {pipeline_mode = #tpu.pipeline_mode<synchronous>, transform_indices = @transform_5, window_bounds = array<i64: 4, 1>}, {pipeline_mode = #tpu.pipeline_mode<synchronous>, transform_indices = @transform_6, window_bounds = array<i64: 9, 4, 4>}, {pipeline_mode = #tpu.pipeline_mode<synchronous>, transform_indices = @transform_7, window_bounds = array<i64: 9, 256>}, {transform_indices = @transform_8, window_bounds = array<i64: 1, 4, 256>}]} {
    %c0 = arith.constant 0 : index
    %c0_0 = arith.constant 0 : index
    %c0_1 = arith.constant 0 : index
    %0 = vector.load %arg1[%c0, %c0_0, %c0_1] : memref<1x32x8xf32, #tpu.memory_space<vmem>>, vector<1x32x8xf32>
    %1 = vector.shape_cast %0 : vector<1x32x8xf32> to vector<32x8xf32>
    %c0_2 = arith.constant 0 : index
    %c0_3 = arith.constant 0 : index
    %2 = vector.load %arg3[%c0_2, %c0_3] : memref<8x16xf32, #tpu.memory_space<vmem>>, vector<8x16xf32>
    %cst = arith.constant dense<0.000000e+00> : vector<32x16xf32>
    %3 = tpu.matmul %1, %2, %cst {dimension_numbers = #tpu.dot_dimension_numbers<[1], [0], [0], [1], [0, 0, 1, 1], [], []>} : vector<32x8xf32>, vector<8x16xf32>, vector<32x16xf32> -> vector<32x16xf32>
    %4 = vector.shape_cast %3 : vector<32x16xf32> to vector<4x8x16xf32>
    %c0_4 = arith.constant 0 : index
    %c0_5 = arith.constant 0 : index
    %c0_6 = arith.constant 0 : index
    %5 = vector.load %arg4[%c0_4, %c0_5, %c0_6] : memref<4x16x8xf32, #tpu.memory_space<vmem>>, vector<4x16x8xf32>
    %cst_7 = arith.constant dense<0.000000e+00> : vector<4x16x16xf32>
    %6 = tpu.matmul %5, %4, %cst_7 {dimension_numbers = #tpu.dot_dimension_numbers<[2], [1], [1], [2], [0, 0, 0, 1, 1, 2], [0], [0]>} : vector<4x16x8xf32>, vector<4x8x16xf32>, vector<4x16x16xf32> -> vector<4x16x16xf32>
    %c0_8 = arith.constant 0 : index
    %c0_9 = arith.constant 0 : index
    %c0_10 = arith.constant 0 : index
    %7 = vector.load %arg2[%c0_8, %c0_9, %c0_10] : memref<1x4x256xf32, #tpu.memory_space<vmem>>, vector<1x4x256xf32>
    %8 = vector.shape_cast %7 : vector<1x4x256xf32> to vector<4x256xf32>
    %c0_11 = arith.constant 0 : index
    %c0_12 = arith.constant 0 : index
    %9 = vector.load %arg5[%c0_11, %c0_12] : memref<4x1xf32, #tpu.memory_space<vmem>>, vector<4x1xf32>
    %c0_13 = arith.constant 0 : index
    %c0_14 = arith.constant 0 : index
    %10 = vector.load %arg6[%c0_13, %c0_14] : memref<4x1xf32, #tpu.memory_space<vmem>>, vector<4x1xf32>
    %11 = vector.extract_strided_slice %6 {offsets = [0, 0, 0], sizes = [4, 1, 16], strides = [1, 1, 1]} : vector<4x16x16xf32> to vector<4x1x16xf32>
    %12 = vector.shape_cast %11 : vector<4x1x16xf32> to vector<4x16xf32>
    %13 = vector.extract_strided_slice %8 {offsets = [0, 0], sizes = [4, 16], strides = [1, 1]} : vector<4x256xf32> to vector<4x16xf32>
    %14 = arith.addf %12, %13 : vector<4x16xf32>
    %15 = vector.broadcast %9 : vector<4x1xf32> to vector<4x16xf32>
    %16 = arith.mulf %14, %15 : vector<4x16xf32>
    %17 = vector.broadcast %10 : vector<4x1xf32> to vector<4x16xf32>
    %18 = arith.addf %16, %17 : vector<4x16xf32>
    %cst_15 = arith.constant 0.000000e+00 : f32
    %19 = vector.broadcast %cst_15 : f32 to vector<4x16xf32>
    %20 = arith.maximumf %18, %19 : vector<4x16xf32>
    %c0_16 = arith.constant 0 : index
    %c0_17 = arith.constant 0 : index
    %21 = vector.load %arg10[%c0_16, %c0_17] : memref<4x256xf32, #tpu.memory_space<vmem>>, vector<4x16xf32>
    tpu.vector_store %arg10[%c0_16, %c0_17], %20 {strides = array<i32>} : memref<4x256xf32, #tpu.memory_space<vmem>>, vector<4x16xf32>,
    %22 = vector.extract_strided_slice %6 {offsets = [0, 1, 0], sizes = [4, 1, 16], strides = [1, 1, 1]} : vector<4x16x16xf32> to vector<4x1x16xf32>
    %23 = vector.shape_cast %22 : vector<4x1x16xf32> to vector<4x16xf32>
    %24 = vector.extract_strided_slice %8 {offsets = [0, 16], sizes = [4, 16], strides = [1, 1]} : vector<4x256xf32> to vector<4x16xf32>
    %25 = arith.addf %23, %24 : vector<4x16xf32>
    %26 = vector.broadcast %9 : vector<4x1xf32> to vector<4x16xf32>
    %27 = arith.mulf %25, %26 : vector<4x16xf32>
    %28 = vector.broadcast %10 : vector<4x1xf32> to vector<4x16xf32>
    %29 = arith.addf %27, %28 : vector<4x16xf32>
    %cst_18 = arith.constant 0.000000e+00 : f32
    %30 = vector.broadcast %cst_18 : f32 to vector<4x16xf32>
    %31 = arith.maximumf %29, %30 : vector<4x16xf32>
    %c0_19 = arith.constant 0 : index
    %c16 = arith.constant 16 : index
    %32 = vector.load %arg10[%c0_19, %c16] : memref<4x256xf32, #tpu.memory_space<vmem>>, vector<4x16xf32>
    tpu.vector_store %arg10[%c0_19, %c16], %31 {strides = array<i32>} : memref<4x256xf32, #tpu.memory_space<vmem>>, vector<4x16xf32>,
    %33 = vector.extract_strided_slice %6 {offsets = [0, 2, 0], sizes = [4, 1, 16], strides = [1, 1, 1]} : vector<4x16x16xf32> to vector<4x1x16xf32>
    %34 = vector.shape_cast %33 : vector<4x1x16xf32> to vector<4x16xf32>
    %35 = vector.extract_strided_slice %8 {offsets = [0, 32], sizes = [4, 16], strides = [1, 1]} : vector<4x256xf32> to vector<4x16xf32>
    %36 = arith.addf %34, %35 : vector<4x16xf32>
    %37 = vector.broadcast %9 : vector<4x1xf32> to vector<4x16xf32>
    %38 = arith.mulf %36, %37 : vector<4x16xf32>
    %39 = vector.broadcast %10 : vector<4x1xf32> to vector<4x16xf32>
    %40 = arith.addf %38, %39 : vector<4x16xf32>
    %cst_20 = arith.constant 0.000000e+00 : f32
    %41 = vector.broadcast %cst_20 : f32 to vector<4x16xf32>
    %42 = arith.maximumf %40, %41 : vector<4x16xf32>
    %c0_21 = arith.constant 0 : index
    %c32 = arith.constant 32 : index
    %43 = vector.load %arg10[%c0_21, %c32] : memref<4x256xf32, #tpu.memory_space<vmem>>, vector<4x16xf32>
    tpu.vector_store %arg10[%c0_21, %c32], %42 {strides = array<i32>} : memref<4x256xf32, #tpu.memory_space<vmem>>, vector<4x16xf32>,
    %44 = vector.extract_strided_slice %6 {offsets = [0, 3, 0], sizes = [4, 1, 16], strides = [1, 1, 1]} : vector<4x16x16xf32> to vector<4x1x16xf32>
    %45 = vector.shape_cast %44 : vector<4x1x16xf32> to vector<4x16xf32>
    %46 = vector.extract_strided_slice %8 {offsets = [0, 48], sizes = [4, 16], strides = [1, 1]} : vector<4x256xf32> to vector<4x16xf32>
    %47 = arith.addf %45, %46 : vector<4x16xf32>
    %48 = vector.broadcast %9 : vector<4x1xf32> to vector<4x16xf32>
    %49 = arith.mulf %47, %48 : vector<4x16xf32>
    %50 = vector.broadcast %10 : vector<4x1xf32> to vector<4x16xf32>
    %51 = arith.addf %49, %50 : vector<4x16xf32>
    %cst_22 = arith.constant 0.000000e+00 : f32
    %52 = vector.broadcast %cst_22 : f32 to vector<4x16xf32>
    %53 = arith.maximumf %51, %52 : vector<4x16xf32>
    %c0_23 = arith.constant 0 : index
    %c48 = arith.constant 48 : index
    %54 = vector.load %arg10[%c0_23, %c48] : memref<4x256xf32, #tpu.memory_space<vmem>>, vector<4x16xf32>
    tpu.vector_store %arg10[%c0_23, %c48], %53 {strides = array<i32>} : memref<4x256xf32, #tpu.memory_space<vmem>>, vector<4x16xf32>,
    %55 = vector.extract_strided_slice %6 {offsets = [0, 4, 0], sizes = [4, 1, 16], strides = [1, 1, 1]} : vector<4x16x16xf32> to vector<4x1x16xf32>
    %56 = vector.shape_cast %55 : vector<4x1x16xf32> to vector<4x16xf32>
    %57 = vector.extract_strided_slice %8 {offsets = [0, 64], sizes = [4, 16], strides = [1, 1]} : vector<4x256xf32> to vector<4x16xf32>
    %58 = arith.addf %56, %57 : vector<4x16xf32>
    %59 = vector.broadcast %9 : vector<4x1xf32> to vector<4x16xf32>
    %60 = arith.mulf %58, %59 : vector<4x16xf32>
    %61 = vector.broadcast %10 : vector<4x1xf32> to vector<4x16xf32>
    %62 = arith.addf %60, %61 : vector<4x16xf32>
    %cst_24 = arith.constant 0.000000e+00 : f32
    %63 = vector.broadcast %cst_24 : f32 to vector<4x16xf32>
    %64 = arith.maximumf %62, %63 : vector<4x16xf32>
    %c0_25 = arith.constant 0 : index
    %c64 = arith.constant 64 : index
    %65 = vector.load %arg10[%c0_25, %c64] : memref<4x256xf32, #tpu.memory_space<vmem>>, vector<4x16xf32>
    tpu.vector_store %arg10[%c0_25, %c64], %64 {strides = array<i32>} : memref<4x256xf32, #tpu.memory_space<vmem>>, vector<4x16xf32>,
    %66 = vector.extract_strided_slice %6 {offsets = [0, 5, 0], sizes = [4, 1, 16], strides = [1, 1, 1]} : vector<4x16x16xf32> to vector<4x1x16xf32>
    %67 = vector.shape_cast %66 : vector<4x1x16xf32> to vector<4x16xf32>
    %68 = vector.extract_strided_slice %8 {offsets = [0, 80], sizes = [4, 16], strides = [1, 1]} : vector<4x256xf32> to vector<4x16xf32>
    %69 = arith.addf %67, %68 : vector<4x16xf32>
    %70 = vector.broadcast %9 : vector<4x1xf32> to vector<4x16xf32>
    %71 = arith.mulf %69, %70 : vector<4x16xf32>
    %72 = vector.broadcast %10 : vector<4x1xf32> to vector<4x16xf32>
    %73 = arith.addf %71, %72 : vector<4x16xf32>
    %cst_26 = arith.constant 0.000000e+00 : f32
    %74 = vector.broadcast %cst_26 : f32 to vector<4x16xf32>
    %75 = arith.maximumf %73, %74 : vector<4x16xf32>
    %c0_27 = arith.constant 0 : index
    %c80 = arith.constant 80 : index
    %76 = vector.load %arg10[%c0_27, %c80] : memref<4x256xf32, #tpu.memory_space<vmem>>, vector<4x16xf32>
    tpu.vector_store %arg10[%c0_27, %c80], %75 {strides = array<i32>} : memref<4x256xf32, #tpu.memory_space<vmem>>, vector<4x16xf32>,
    %77 = vector.extract_strided_slice %6 {offsets = [0, 6, 0], sizes = [4, 1, 16], strides = [1, 1, 1]} : vector<4x16x16xf32> to vector<4x1x16xf32>
    %78 = vector.shape_cast %77 : vector<4x1x16xf32> to vector<4x16xf32>
    %79 = vector.extract_strided_slice %8 {offsets = [0, 96], sizes = [4, 16], strides = [1, 1]} : vector<4x256xf32> to vector<4x16xf32>
    %80 = arith.addf %78, %79 : vector<4x16xf32>
    %81 = vector.broadcast %9 : vector<4x1xf32> to vector<4x16xf32>
    %82 = arith.mulf %80, %81 : vector<4x16xf32>
    %83 = vector.broadcast %10 : vector<4x1xf32> to vector<4x16xf32>
    %84 = arith.addf %82, %83 : vector<4x16xf32>
    %cst_28 = arith.constant 0.000000e+00 : f32
    %85 = vector.broadcast %cst_28 : f32 to vector<4x16xf32>
    %86 = arith.maximumf %84, %85 : vector<4x16xf32>
    %c0_29 = arith.constant 0 : index
    %c96 = arith.constant 96 : index
    %87 = vector.load %arg10[%c0_29, %c96] : memref<4x256xf32, #tpu.memory_space<vmem>>, vector<4x16xf32>
    tpu.vector_store %arg10[%c0_29, %c96], %86 {strides = array<i32>} : memref<4x256xf32, #tpu.memory_space<vmem>>, vector<4x16xf32>,
    %88 = vector.extract_strided_slice %6 {offsets = [0, 7, 0], sizes = [4, 1, 16], strides = [1, 1, 1]} : vector<4x16x16xf32> to vector<4x1x16xf32>
    %89 = vector.shape_cast %88 : vector<4x1x16xf32> to vector<4x16xf32>
    %90 = vector.extract_strided_slice %8 {offsets = [0, 112], sizes = [4, 16], strides = [1, 1]} : vector<4x256xf32> to vector<4x16xf32>
    %91 = arith.addf %89, %90 : vector<4x16xf32>
    %92 = vector.broadcast %9 : vector<4x1xf32> to vector<4x16xf32>
    %93 = arith.mulf %91, %92 : vector<4x16xf32>
    %94 = vector.broadcast %10 : vector<4x1xf32> to vector<4x16xf32>
    %95 = arith.addf %93, %94 : vector<4x16xf32>
    %cst_30 = arith.constant 0.000000e+00 : f32
    %96 = vector.broadcast %cst_30 : f32 to vector<4x16xf32>
    %97 = arith.maximumf %95, %96 : vector<4x16xf32>
    %c0_31 = arith.constant 0 : index
    %c112 = arith.constant 112 : index
    %98 = vector.load %arg10[%c0_31, %c112] : memref<4x256xf32, #tpu.memory_space<vmem>>, vector<4x16xf32>
    tpu.vector_store %arg10[%c0_31, %c112], %97 {strides = array<i32>} : memref<4x256xf32, #tpu.memory_space<vmem>>, vector<4x16xf32>,
    %99 = vector.extract_strided_slice %6 {offsets = [0, 8, 0], sizes = [4, 1, 16], strides = [1, 1, 1]} : vector<4x16x16xf32> to vector<4x1x16xf32>
    %100 = vector.shape_cast %99 : vector<4x1x16xf32> to vector<4x16xf32>
    %101 = vector.extract_strided_slice %8 {offsets = [0, 128], sizes = [4, 16], strides = [1, 1]} : vector<4x256xf32> to vector<4x16xf32>
    %102 = arith.addf %100, %101 : vector<4x16xf32>
    %103 = vector.broadcast %9 : vector<4x1xf32> to vector<4x16xf32>
    %104 = arith.mulf %102, %103 : vector<4x16xf32>
    %105 = vector.broadcast %10 : vector<4x1xf32> to vector<4x16xf32>
    %106 = arith.addf %104, %105 : vector<4x16xf32>
    %cst_32 = arith.constant 0.000000e+00 : f32
    %107 = vector.broadcast %cst_32 : f32 to vector<4x16xf32>
    %108 = arith.maximumf %106, %107 : vector<4x16xf32>
    %c0_33 = arith.constant 0 : index
    %c128 = arith.constant 128 : index
    %109 = vector.load %arg10[%c0_33, %c128] : memref<4x256xf32, #tpu.memory_space<vmem>>, vector<4x16xf32>
    tpu.vector_store %arg10[%c0_33, %c128], %108 {strides = array<i32>} : memref<4x256xf32, #tpu.memory_space<vmem>>, vector<4x16xf32>,
    %110 = vector.extract_strided_slice %6 {offsets = [0, 9, 0], sizes = [4, 1, 16], strides = [1, 1, 1]} : vector<4x16x16xf32> to vector<4x1x16xf32>
    %111 = vector.shape_cast %110 : vector<4x1x16xf32> to vector<4x16xf32>
    %112 = vector.extract_strided_slice %8 {offsets = [0, 144], sizes = [4, 16], strides = [1, 1]} : vector<4x256xf32> to vector<4x16xf32>
    %113 = arith.addf %111, %112 : vector<4x16xf32>
    %114 = vector.broadcast %9 : vector<4x1xf32> to vector<4x16xf32>
    %115 = arith.mulf %113, %114 : vector<4x16xf32>
    %116 = vector.broadcast %10 : vector<4x1xf32> to vector<4x16xf32>
    %117 = arith.addf %115, %116 : vector<4x16xf32>
    %cst_34 = arith.constant 0.000000e+00 : f32
    %118 = vector.broadcast %cst_34 : f32 to vector<4x16xf32>
    %119 = arith.maximumf %117, %118 : vector<4x16xf32>
    %c0_35 = arith.constant 0 : index
    %c144 = arith.constant 144 : index
    %120 = vector.load %arg10[%c0_35, %c144] : memref<4x256xf32, #tpu.memory_space<vmem>>, vector<4x16xf32>
    tpu.vector_store %arg10[%c0_35, %c144], %119 {strides = array<i32>} : memref<4x256xf32, #tpu.memory_space<vmem>>, vector<4x16xf32>,
    %121 = vector.extract_strided_slice %6 {offsets = [0, 10, 0], sizes = [4, 1, 16], strides = [1, 1, 1]} : vector<4x16x16xf32> to vector<4x1x16xf32>
    %122 = vector.shape_cast %121 : vector<4x1x16xf32> to vector<4x16xf32>
    %123 = vector.extract_strided_slice %8 {offsets = [0, 160], sizes = [4, 16], strides = [1, 1]} : vector<4x256xf32> to vector<4x16xf32>
    %124 = arith.addf %122, %123 : vector<4x16xf32>
    %125 = vector.broadcast %9 : vector<4x1xf32> to vector<4x16xf32>
    %126 = arith.mulf %124, %125 : vector<4x16xf32>
    %127 = vector.broadcast %10 : vector<4x1xf32> to vector<4x16xf32>
    %128 = arith.addf %126, %127 : vector<4x16xf32>
    %cst_36 = arith.constant 0.000000e+00 : f32
    %129 = vector.broadcast %cst_36 : f32 to vector<4x16xf32>
    %130 = arith.maximumf %128, %129 : vector<4x16xf32>
    %c0_37 = arith.constant 0 : index
    %c160 = arith.constant 160 : index
    %131 = vector.load %arg10[%c0_37, %c160] : memref<4x256xf32, #tpu.memory_space<vmem>>, vector<4x16xf32>
    tpu.vector_store %arg10[%c0_37, %c160], %130 {strides = array<i32>} : memref<4x256xf32, #tpu.memory_space<vmem>>, vector<4x16xf32>,
    %132 = vector.extract_strided_slice %6 {offsets = [0, 11, 0], sizes = [4, 1, 16], strides = [1, 1, 1]} : vector<4x16x16xf32> to vector<4x1x16xf32>
    %133 = vector.shape_cast %132 : vector<4x1x16xf32> to vector<4x16xf32>
    %134 = vector.extract_strided_slice %8 {offsets = [0, 176], sizes = [4, 16], strides = [1, 1]} : vector<4x256xf32> to vector<4x16xf32>
    %135 = arith.addf %133, %134 : vector<4x16xf32>
    %136 = vector.broadcast %9 : vector<4x1xf32> to vector<4x16xf32>
    %137 = arith.mulf %135, %136 : vector<4x16xf32>
    %138 = vector.broadcast %10 : vector<4x1xf32> to vector<4x16xf32>
    %139 = arith.addf %137, %138 : vector<4x16xf32>
    %cst_38 = arith.constant 0.000000e+00 : f32
    %140 = vector.broadcast %cst_38 : f32 to vector<4x16xf32>
    %141 = arith.maximumf %139, %140 : vector<4x16xf32>
    %c0_39 = arith.constant 0 : index
    %c176 = arith.constant 176 : index
    %142 = vector.load %arg10[%c0_39, %c176] : memref<4x256xf32, #tpu.memory_space<vmem>>, vector<4x16xf32>
    tpu.vector_store %arg10[%c0_39, %c176], %141 {strides = array<i32>} : memref<4x256xf32, #tpu.memory_space<vmem>>, vector<4x16xf32>,
    %143 = vector.extract_strided_slice %6 {offsets = [0, 12, 0], sizes = [4, 1, 16], strides = [1, 1, 1]} : vector<4x16x16xf32> to vector<4x1x16xf32>
    %144 = vector.shape_cast %143 : vector<4x1x16xf32> to vector<4x16xf32>
    %145 = vector.extract_strided_slice %8 {offsets = [0, 192], sizes = [4, 16], strides = [1, 1]} : vector<4x256xf32> to vector<4x16xf32>
    %146 = arith.addf %144, %145 : vector<4x16xf32>
    %147 = vector.broadcast %9 : vector<4x1xf32> to vector<4x16xf32>
    %148 = arith.mulf %146, %147 : vector<4x16xf32>
    %149 = vector.broadcast %10 : vector<4x1xf32> to vector<4x16xf32>
    %150 = arith.addf %148, %149 : vector<4x16xf32>
    %cst_40 = arith.constant 0.000000e+00 : f32
    %151 = vector.broadcast %cst_40 : f32 to vector<4x16xf32>
    %152 = arith.maximumf %150, %151 : vector<4x16xf32>
    %c0_41 = arith.constant 0 : index
    %c192 = arith.constant 192 : index
    %153 = vector.load %arg10[%c0_41, %c192] : memref<4x256xf32, #tpu.memory_space<vmem>>, vector<4x16xf32>
    tpu.vector_store %arg10[%c0_41, %c192], %152 {strides = array<i32>} : memref<4x256xf32, #tpu.memory_space<vmem>>, vector<4x16xf32>,
    %154 = vector.extract_strided_slice %6 {offsets = [0, 13, 0], sizes = [4, 1, 16], strides = [1, 1, 1]} : vector<4x16x16xf32> to vector<4x1x16xf32>
    %155 = vector.shape_cast %154 : vector<4x1x16xf32> to vector<4x16xf32>
    %156 = vector.extract_strided_slice %8 {offsets = [0, 208], sizes = [4, 16], strides = [1, 1]} : vector<4x256xf32> to vector<4x16xf32>
    %157 = arith.addf %155, %156 : vector<4x16xf32>
    %158 = vector.broadcast %9 : vector<4x1xf32> to vector<4x16xf32>
    %159 = arith.mulf %157, %158 : vector<4x16xf32>
    %160 = vector.broadcast %10 : vector<4x1xf32> to vector<4x16xf32>
    %161 = arith.addf %159, %160 : vector<4x16xf32>
    %cst_42 = arith.constant 0.000000e+00 : f32
    %162 = vector.broadcast %cst_42 : f32 to vector<4x16xf32>
    %163 = arith.maximumf %161, %162 : vector<4x16xf32>
    %c0_43 = arith.constant 0 : index
    %c208 = arith.constant 208 : index
    %164 = vector.load %arg10[%c0_43, %c208] : memref<4x256xf32, #tpu.memory_space<vmem>>, vector<4x16xf32>
    tpu.vector_store %arg10[%c0_43, %c208], %163 {strides = array<i32>} : memref<4x256xf32, #tpu.memory_space<vmem>>, vector<4x16xf32>,
    %165 = vector.extract_strided_slice %6 {offsets = [0, 14, 0], sizes = [4, 1, 16], strides = [1, 1, 1]} : vector<4x16x16xf32> to vector<4x1x16xf32>
    %166 = vector.shape_cast %165 : vector<4x1x16xf32> to vector<4x16xf32>
    %167 = vector.extract_strided_slice %8 {offsets = [0, 224], sizes = [4, 16], strides = [1, 1]} : vector<4x256xf32> to vector<4x16xf32>
    %168 = arith.addf %166, %167 : vector<4x16xf32>
    %169 = vector.broadcast %9 : vector<4x1xf32> to vector<4x16xf32>
    %170 = arith.mulf %168, %169 : vector<4x16xf32>
    %171 = vector.broadcast %10 : vector<4x1xf32> to vector<4x16xf32>
    %172 = arith.addf %170, %171 : vector<4x16xf32>
    %cst_44 = arith.constant 0.000000e+00 : f32
    %173 = vector.broadcast %cst_44 : f32 to vector<4x16xf32>
    %174 = arith.maximumf %172, %173 : vector<4x16xf32>
    %c0_45 = arith.constant 0 : index
    %c224 = arith.constant 224 : index
    %175 = vector.load %arg10[%c0_45, %c224] : memref<4x256xf32, #tpu.memory_space<vmem>>, vector<4x16xf32>
    tpu.vector_store %arg10[%c0_45, %c224], %174 {strides = array<i32>} : memref<4x256xf32, #tpu.memory_space<vmem>>, vector<4x16xf32>,
    %176 = vector.extract_strided_slice %6 {offsets = [0, 15, 0], sizes = [4, 1, 16], strides = [1, 1, 1]} : vector<4x16x16xf32> to vector<4x1x16xf32>
    %177 = vector.shape_cast %176 : vector<4x1x16xf32> to vector<4x16xf32>
    %178 = vector.extract_strided_slice %8 {offsets = [0, 240], sizes = [4, 16], strides = [1, 1]} : vector<4x256xf32> to vector<4x16xf32>
    %179 = arith.addf %177, %178 : vector<4x16xf32>
    %180 = vector.broadcast %9 : vector<4x1xf32> to vector<4x16xf32>
    %181 = arith.mulf %179, %180 : vector<4x16xf32>
    %182 = vector.broadcast %10 : vector<4x1xf32> to vector<4x16xf32>
    %183 = arith.addf %181, %182 : vector<4x16xf32>
    %cst_46 = arith.constant 0.000000e+00 : f32
    %184 = vector.broadcast %cst_46 : f32 to vector<4x16xf32>
    %185 = arith.maximumf %183, %184 : vector<4x16xf32>
    %c0_47 = arith.constant 0 : index
    %c240 = arith.constant 240 : index
    %186 = vector.load %arg10[%c0_47, %c240] : memref<4x256xf32, #tpu.memory_space<vmem>>, vector<4x16xf32>
    tpu.vector_store %arg10[%c0_47, %c240], %185 {strides = array<i32>} : memref<4x256xf32, #tpu.memory_space<vmem>>, vector<4x16xf32>,
    %c0_48 = arith.constant 0 : index
    %c0_49 = arith.constant 0 : index
    %187 = vector.load %arg10[%c0_48, %c0_49] : memref<4x256xf32, #tpu.memory_space<vmem>>, vector<4x256xf32>
    %cst_50 = arith.constant 0.000000e+00 : f32
    %188 = vector.broadcast %cst_50 : f32 to vector<4x256xf32>
    %189 = vector.extract_strided_slice %187 {offsets = [0, 239], sizes = [4, 17], strides = [1, 1]} : vector<4x256xf32> to vector<4x17xf32>
    %190 = vector.extract_strided_slice %187 {offsets = [0, 0], sizes = [4, 239], strides = [1, 1]} : vector<4x256xf32> to vector<4x239xf32>
    %191 = tpu.concatenate %189, %190 in 1 : vector<4x17xf32>, vector<4x239xf32> -> vector<4x256xf32>
    %c0_51 = arith.constant 0 : index
    %c0_52 = arith.constant 0 : index
    %192 = vector.load %arg8[%c0_51, %c0_52] : memref<9x256xf32, #tpu.memory_space<vmem>>, vector<1x256xf32>
    %193 = vector.broadcast %192 : vector<1x256xf32> to vector<4x256xf32>
    %194 = arith.mulf %191, %193 : vector<4x256xf32>
    %c0_53 = arith.constant 0 : index
    %c0_54 = arith.constant 0 : index
    %c0_55 = arith.constant 0 : index
    %195 = vector.load %arg7[%c0_53, %c0_54, %c0_55] : memref<9x4x4xf32, #tpu.memory_space<vmem>>, vector<1x4x4xf32>
    %196 = vector.shape_cast %195 : vector<1x4x4xf32> to vector<4x4xf32>
    %cst_56 = arith.constant dense<0.000000e+00> : vector<4x256xf32>
    %197 = tpu.matmul %196, %194, %cst_56 {dimension_numbers = #tpu.dot_dimension_numbers<[1], [0], [0], [1], [0, 0, 1, 1], [], []>} : vector<4x4xf32>, vector<4x256xf32>, vector<4x256xf32> -> vector<4x256xf32>
    %198 = arith.addf %188, %197 : vector<4x256xf32>
    %199 = vector.extract_strided_slice %187 {offsets = [0, 240], sizes = [4, 16], strides = [1, 1]} : vector<4x256xf32> to vector<4x16xf32>
    %200 = vector.extract_strided_slice %187 {offsets = [0, 0], sizes = [4, 240], strides = [1, 1]} : vector<4x256xf32> to vector<4x240xf32>
    %201 = tpu.concatenate %199, %200 in 1 : vector<4x16xf32>, vector<4x240xf32> -> vector<4x256xf32>
    %c1 = arith.constant 1 : index
    %c0_57 = arith.constant 0 : index
    %202 = vector.load %arg8[%c1, %c0_57] : memref<9x256xf32, #tpu.memory_space<vmem>>, vector<1x256xf32>
    %203 = vector.broadcast %202 : vector<1x256xf32> to vector<4x256xf32>
    %204 = arith.mulf %201, %203 : vector<4x256xf32>
    %c1_58 = arith.constant 1 : index
    %c0_59 = arith.constant 0 : index
    %c0_60 = arith.constant 0 : index
    %205 = vector.load %arg7[%c1_58, %c0_59, %c0_60] : memref<9x4x4xf32, #tpu.memory_space<vmem>>, vector<1x4x4xf32>
    %206 = vector.shape_cast %205 : vector<1x4x4xf32> to vector<4x4xf32>
    %cst_61 = arith.constant dense<0.000000e+00> : vector<4x256xf32>
    %207 = tpu.matmul %206, %204, %cst_61 {dimension_numbers = #tpu.dot_dimension_numbers<[1], [0], [0], [1], [0, 0, 1, 1], [], []>} : vector<4x4xf32>, vector<4x256xf32>, vector<4x256xf32> -> vector<4x256xf32>
    %208 = arith.addf %198, %207 : vector<4x256xf32>
    %209 = vector.extract_strided_slice %187 {offsets = [0, 241], sizes = [4, 15], strides = [1, 1]} : vector<4x256xf32> to vector<4x15xf32>
    %210 = vector.extract_strided_slice %187 {offsets = [0, 0], sizes = [4, 241], strides = [1, 1]} : vector<4x256xf32> to vector<4x241xf32>
    %211 = tpu.concatenate %209, %210 in 1 : vector<4x15xf32>, vector<4x241xf32> -> vector<4x256xf32>
    %c2 = arith.constant 2 : index
    %c0_62 = arith.constant 0 : index
    %212 = vector.load %arg8[%c2, %c0_62] : memref<9x256xf32, #tpu.memory_space<vmem>>, vector<1x256xf32>
    %213 = vector.broadcast %212 : vector<1x256xf32> to vector<4x256xf32>
    %214 = arith.mulf %211, %213 : vector<4x256xf32>
    %c2_63 = arith.constant 2 : index
    %c0_64 = arith.constant 0 : index
    %c0_65 = arith.constant 0 : index
    %215 = vector.load %arg7[%c2_63, %c0_64, %c0_65] : memref<9x4x4xf32, #tpu.memory_space<vmem>>, vector<1x4x4xf32>
    %216 = vector.shape_cast %215 : vector<1x4x4xf32> to vector<4x4xf32>
    %cst_66 = arith.constant dense<0.000000e+00> : vector<4x256xf32>
    %217 = tpu.matmul %216, %214, %cst_66 {dimension_numbers = #tpu.dot_dimension_numbers<[1], [0], [0], [1], [0, 0, 1, 1], [], []>} : vector<4x4xf32>, vector<4x256xf32>, vector<4x256xf32> -> vector<4x256xf32>
    %218 = arith.addf %208, %217 : vector<4x256xf32>
    %219 = vector.extract_strided_slice %187 {offsets = [0, 255], sizes = [4, 1], strides = [1, 1]} : vector<4x256xf32> to vector<4x1xf32>
    %220 = vector.extract_strided_slice %187 {offsets = [0, 0], sizes = [4, 255], strides = [1, 1]} : vector<4x256xf32> to vector<4x255xf32>
    %221 = tpu.concatenate %219, %220 in 1 : vector<4x1xf32>, vector<4x255xf32> -> vector<4x256xf32>
    %c3 = arith.constant 3 : index
    %c0_67 = arith.constant 0 : index
    %222 = vector.load %arg8[%c3, %c0_67] : memref<9x256xf32, #tpu.memory_space<vmem>>, vector<1x256xf32>
    %223 = vector.broadcast %222 : vector<1x256xf32> to vector<4x256xf32>
    %224 = arith.mulf %221, %223 : vector<4x256xf32>
    %c3_68 = arith.constant 3 : index
    %c0_69 = arith.constant 0 : index
    %c0_70 = arith.constant 0 : index
    %225 = vector.load %arg7[%c3_68, %c0_69, %c0_70] : memref<9x4x4xf32, #tpu.memory_space<vmem>>, vector<1x4x4xf32>
    %226 = vector.shape_cast %225 : vector<1x4x4xf32> to vector<4x4xf32>
    %cst_71 = arith.constant dense<0.000000e+00> : vector<4x256xf32>
    %227 = tpu.matmul %226, %224, %cst_71 {dimension_numbers = #tpu.dot_dimension_numbers<[1], [0], [0], [1], [0, 0, 1, 1], [], []>} : vector<4x4xf32>, vector<4x256xf32>, vector<4x256xf32> -> vector<4x256xf32>
    %228 = arith.addf %218, %227 : vector<4x256xf32>
    %c4 = arith.constant 4 : index
    %c0_72 = arith.constant 0 : index
    %c0_73 = arith.constant 0 : index
    %229 = vector.load %arg7[%c4, %c0_72, %c0_73] : memref<9x4x4xf32, #tpu.memory_space<vmem>>, vector<1x4x4xf32>
    %230 = vector.shape_cast %229 : vector<1x4x4xf32> to vector<4x4xf32>
    %cst_74 = arith.constant dense<0.000000e+00> : vector<4x256xf32>
    %231 = tpu.matmul %230, %187, %cst_74 {dimension_numbers = #tpu.dot_dimension_numbers<[1], [0], [0], [1], [0, 0, 1, 1], [], []>} : vector<4x4xf32>, vector<4x256xf32>, vector<4x256xf32> -> vector<4x256xf32>
    %232 = arith.addf %228, %231 : vector<4x256xf32>
    %233 = vector.extract_strided_slice %187 {offsets = [0, 1], sizes = [4, 255], strides = [1, 1]} : vector<4x256xf32> to vector<4x255xf32>
    %234 = vector.extract_strided_slice %187 {offsets = [0, 0], sizes = [4, 1], strides = [1, 1]} : vector<4x256xf32> to vector<4x1xf32>
    %235 = tpu.concatenate %233, %234 in 1 : vector<4x255xf32>, vector<4x1xf32> -> vector<4x256xf32>
    %c5 = arith.constant 5 : index
    %c0_75 = arith.constant 0 : index
    %236 = vector.load %arg8[%c5, %c0_75] : memref<9x256xf32, #tpu.memory_space<vmem>>, vector<1x256xf32>
    %237 = vector.broadcast %236 : vector<1x256xf32> to vector<4x256xf32>
    %238 = arith.mulf %235, %237 : vector<4x256xf32>
    %c5_76 = arith.constant 5 : index
    %c0_77 = arith.constant 0 : index
    %c0_78 = arith.constant 0 : index
    %239 = vector.load %arg7[%c5_76, %c0_77, %c0_78] : memref<9x4x4xf32, #tpu.memory_space<vmem>>, vector<1x4x4xf32>
    %240 = vector.shape_cast %239 : vector<1x4x4xf32> to vector<4x4xf32>
    %cst_79 = arith.constant dense<0.000000e+00> : vector<4x256xf32>
    %241 = tpu.matmul %240, %238, %cst_79 {dimension_numbers = #tpu.dot_dimension_numbers<[1], [0], [0], [1], [0, 0, 1, 1], [], []>} : vector<4x4xf32>, vector<4x256xf32>, vector<4x256xf32> -> vector<4x256xf32>
    %242 = arith.addf %232, %241 : vector<4x256xf32>
    %243 = vector.extract_strided_slice %187 {offsets = [0, 15], sizes = [4, 241], strides = [1, 1]} : vector<4x256xf32> to vector<4x241xf32>
    %244 = vector.extract_strided_slice %187 {offsets = [0, 0], sizes = [4, 15], strides = [1, 1]} : vector<4x256xf32> to vector<4x15xf32>
    %245 = tpu.concatenate %243, %244 in 1 : vector<4x241xf32>, vector<4x15xf32> -> vector<4x256xf32>
    %c6 = arith.constant 6 : index
    %c0_80 = arith.constant 0 : index
    %246 = vector.load %arg8[%c6, %c0_80] : memref<9x256xf32, #tpu.memory_space<vmem>>, vector<1x256xf32>
    %247 = vector.broadcast %246 : vector<1x256xf32> to vector<4x256xf32>
    %248 = arith.mulf %245, %247 : vector<4x256xf32>
    %c6_81 = arith.constant 6 : index
    %c0_82 = arith.constant 0 : index
    %c0_83 = arith.constant 0 : index
    %249 = vector.load %arg7[%c6_81, %c0_82, %c0_83] : memref<9x4x4xf32, #tpu.memory_space<vmem>>, vector<1x4x4xf32>
    %250 = vector.shape_cast %249 : vector<1x4x4xf32> to vector<4x4xf32>
    %cst_84 = arith.constant dense<0.000000e+00> : vector<4x256xf32>
    %251 = tpu.matmul %250, %248, %cst_84 {dimension_numbers = #tpu.dot_dimension_numbers<[1], [0], [0], [1], [0, 0, 1, 1], [], []>} : vector<4x4xf32>, vector<4x256xf32>, vector<4x256xf32> -> vector<4x256xf32>
    %252 = arith.addf %242, %251 : vector<4x256xf32>
    %253 = vector.extract_strided_slice %187 {offsets = [0, 16], sizes = [4, 240], strides = [1, 1]} : vector<4x256xf32> to vector<4x240xf32>
    %254 = vector.extract_strided_slice %187 {offsets = [0, 0], sizes = [4, 16], strides = [1, 1]} : vector<4x256xf32> to vector<4x16xf32>
    %255 = tpu.concatenate %253, %254 in 1 : vector<4x240xf32>, vector<4x16xf32> -> vector<4x256xf32>
    %c7 = arith.constant 7 : index
    %c0_85 = arith.constant 0 : index
    %256 = vector.load %arg8[%c7, %c0_85] : memref<9x256xf32, #tpu.memory_space<vmem>>, vector<1x256xf32>
    %257 = vector.broadcast %256 : vector<1x256xf32> to vector<4x256xf32>
    %258 = arith.mulf %255, %257 : vector<4x256xf32>
    %c7_86 = arith.constant 7 : index
    %c0_87 = arith.constant 0 : index
    %c0_88 = arith.constant 0 : index
    %259 = vector.load %arg7[%c7_86, %c0_87, %c0_88] : memref<9x4x4xf32, #tpu.memory_space<vmem>>, vector<1x4x4xf32>
    %260 = vector.shape_cast %259 : vector<1x4x4xf32> to vector<4x4xf32>
    %cst_89 = arith.constant dense<0.000000e+00> : vector<4x256xf32>
    %261 = tpu.matmul %260, %258, %cst_89 {dimension_numbers = #tpu.dot_dimension_numbers<[1], [0], [0], [1], [0, 0, 1, 1], [], []>} : vector<4x4xf32>, vector<4x256xf32>, vector<4x256xf32> -> vector<4x256xf32>
    %262 = arith.addf %252, %261 : vector<4x256xf32>
    %263 = vector.extract_strided_slice %187 {offsets = [0, 17], sizes = [4, 239], strides = [1, 1]} : vector<4x256xf32> to vector<4x239xf32>
    %264 = vector.extract_strided_slice %187 {offsets = [0, 0], sizes = [4, 17], strides = [1, 1]} : vector<4x256xf32> to vector<4x17xf32>
    %265 = tpu.concatenate %263, %264 in 1 : vector<4x239xf32>, vector<4x17xf32> -> vector<4x256xf32>
    %c8 = arith.constant 8 : index
    %c0_90 = arith.constant 0 : index
    %266 = vector.load %arg8[%c8, %c0_90] : memref<9x256xf32, #tpu.memory_space<vmem>>, vector<1x256xf32>
    %267 = vector.broadcast %266 : vector<1x256xf32> to vector<4x256xf32>
    %268 = arith.mulf %265, %267 : vector<4x256xf32>
    %c8_91 = arith.constant 8 : index
    %c0_92 = arith.constant 0 : index
    %c0_93 = arith.constant 0 : index
    %269 = vector.load %arg7[%c8_91, %c0_92, %c0_93] : memref<9x4x4xf32, #tpu.memory_space<vmem>>, vector<1x4x4xf32>
    %270 = vector.shape_cast %269 : vector<1x4x4xf32> to vector<4x4xf32>
    %cst_94 = arith.constant dense<0.000000e+00> : vector<4x256xf32>
    %271 = tpu.matmul %270, %268, %cst_94 {dimension_numbers = #tpu.dot_dimension_numbers<[1], [0], [0], [1], [0, 0, 1, 1], [], []>} : vector<4x4xf32>, vector<4x256xf32>, vector<4x256xf32> -> vector<4x256xf32>
    %272 = arith.addf %262, %271 : vector<4x256xf32>
    %c0_95 = arith.constant 0 : index
    %c0_96 = arith.constant 0 : index
    %c0_97 = arith.constant 0 : index
    %273 = vector.load %arg9[%c0_95, %c0_96, %c0_97] : memref<1x4x256xf32, #tpu.memory_space<vmem>>, vector<1x4x256xf32>
    %274 = vector.shape_cast %273 : vector<1x4x256xf32> to vector<4x256xf32>
    %275 = vector.shape_cast %272 : vector<4x256xf32> to vector<1x4x256xf32>
    tpu.vector_store %arg9[%c0_95, %c0_96, %c0_97], %275 {strides = array<i32>} : memref<1x4x256xf32, #tpu.memory_space<vmem>>, vector<1x4x256xf32>,
    return
  }
  func.func @transform_0(%arg0: i32) -> (i32, i32, i32) {
    %c0_i32 = arith.constant 0 : i32
    %c0_i32_0 = arith.constant 0 : i32
    %c0_i32_1 = arith.constant 0 : i32
    return %arg0, %c0_i32, %c0_i32_0 : i32, i32, i32
  }
  func.func @transform_1(%arg0: i32) -> (i32, i32, i32) {
    %c0_i32 = arith.constant 0 : i32
    %c0_i32_0 = arith.constant 0 : i32
    %c0_i32_1 = arith.constant 0 : i32
    return %arg0, %c0_i32, %c0_i32_0 : i32, i32, i32
  }
  func.func @transform_2(%arg0: i32) -> (i32, i32) {
    %c0_i32 = arith.constant 0 : i32
    %c0_i32_0 = arith.constant 0 : i32
    %c0_i32_1 = arith.constant 0 : i32
    return %c0_i32, %c0_i32_0 : i32, i32
  }
  func.func @transform_3(%arg0: i32) -> (i32, i32, i32) {
    %c0_i32 = arith.constant 0 : i32
    %c0_i32_0 = arith.constant 0 : i32
    %c0_i32_1 = arith.constant 0 : i32
    %c0_i32_2 = arith.constant 0 : i32
    return %c0_i32, %c0_i32_0, %c0_i32_1 : i32, i32, i32
  }
  func.func @transform_4(%arg0: i32) -> (i32, i32) {
    %c0_i32 = arith.constant 0 : i32
    %c0_i32_0 = arith.constant 0 : i32
    %c0_i32_1 = arith.constant 0 : i32
    return %c0_i32, %c0_i32_0 : i32, i32
  }
  func.func @transform_5(%arg0: i32) -> (i32, i32) {
    %c0_i32 = arith.constant 0 : i32
    %c0_i32_0 = arith.constant 0 : i32
    %c0_i32_1 = arith.constant 0 : i32
    return %c0_i32, %c0_i32_0 : i32, i32
  }
  func.func @transform_6(%arg0: i32) -> (i32, i32, i32) {
    %c0_i32 = arith.constant 0 : i32
    %c0_i32_0 = arith.constant 0 : i32
    %c0_i32_1 = arith.constant 0 : i32
    %c0_i32_2 = arith.constant 0 : i32
    return %c0_i32, %c0_i32_0, %c0_i32_1 : i32, i32, i32
  }
  func.func @transform_7(%arg0: i32) -> (i32, i32) {
    %c0_i32 = arith.constant 0 : i32
    %c0_i32_0 = arith.constant 0 : i32
    %c0_i32_1 = arith.constant 0 : i32
    return %c0_i32, %c0_i32_0 : i32, i32
  }
  func.func @transform_8(%arg0: i32) -> (i32, i32, i32) {
    %c0_i32 = arith.constant 0 : i32
    %c0_i32_0 = arith.constant 0 : i32
    %c0_i32_1 = arith.constant 0 : i32
    return %arg0, %c0_i32, %c0_i32_0 : i32, i32, i32
  }
}

</mosaic_0001>

<llo_original>
// kernel: tpu_custom_call.1
$region0: #{tpu_custom_call.1}
  #allocation0 [shape = 'u32[]', space=smem, size = 0x4, offset = 0x4, fixed_abs, tag = 'smem constant byte address 0x4 - core index']
  #allocation1 [shape = 'u32[72,128]{1,0:T(1,128)}', space=vmem, size = 0x9000, scoped, tag = 'internal scratch']
  %s0 = inlined_call_operand.hbm [shape: f32[8,128], index: 0, kind: input, shape index: {}]
  %s1 = inlined_call_operand.hbm [shape: f32[8,128], index: 1, kind: output, shape index: {}]
  %s2 = sld [smem:[#allocation0]]
  $region18: #{tpu_custom_call.1} parent=0
    _
  %s4 = ssub.s32 1, %s2
  %s5 = scalar_select 0, %s4, %s2
  $region1: #{tpu_custom_call.1} parent=0
    #allocation2 [shape = 'u8[4096]{0}', space=vmem, size = 0x1000, scoped, tag = 'input window, operand 0, single buffered']
    #allocation3 [shape = 's32[1]{0}', space=sflag, size = 0x4, scoped, tag = 'scoped memory for tpu_custom_call.1']
    #allocation4 [shape = 's32[1]{0}', space=sflag, size = 0x4, scoped, tag = 'scoped memory for tpu_custom_call.1']
    #allocation5 [shape = 'u8[4096]{0}', space=vmem, size = 0x1000, scoped, tag = 'output window, operand 0, single buffered']
    %6 = vsyncpa [#allocation3], 0
    %7 = vsyncpa [#allocation4], 0
    // Predicated region
    $region2: #{tpu_custom_call.1} parent=1 // pred_check
      _
    $region3: #{tpu_custom_call.1} parent=1 // pred_check_branch
      %9 = sbr.rel (0) target = $region5
    $region4: #{tpu_custom_call.1} parent=1 // pred_region
      %11 = vsyncadd [#allocation3], 0
      %s13 = sshll.u32 %s0, 4
      %s14 = int_to_ptr.hbm [resolvable:$true] %s13
      %s15 = sshll.u32 [#allocation2], 4
      %s16 = int_to_ptr.vmem [resolvable:$true] %s15
      %18 = dma.hbm_to_vmem [thread:$0]  %s14, 128, %s16, [#allocation3]
    $region5: #{tpu_custom_call.1} parent=1 // pred_fallthru
      _
    // Predicated region
    $region6: #{tpu_custom_call.1} parent=1 // pred_check
      _
    $region7: #{tpu_custom_call.1} parent=1 // pred_check_branch
      %20 = sbr.rel (0) target = $region9
    $region8: #{tpu_custom_call.1} parent=1 // pred_region
      %22 = dma.done [#allocation3], 128
    $region9: #{tpu_custom_call.1} parent=1 // pred_fallthru
      _
    %v23 = vld [vmem:[#allocation2] sm:$0xff]
    %24 = vrot.lane.b32.xlu0 %v23, 1
    %v25 = vpop.permute.xlu0 %24
    %26 = vst [vmem:[#allocation5] sm:$0xff] %v25
    // Predicated region
    $region10: #{tpu_custom_call.1} parent=1 // pred_check
      _
    $region11: #{tpu_custom_call.1} parent=1 // pred_check_branch
      %28 = sbr.rel (0) target = $region13
    $region12: #{tpu_custom_call.1} parent=1 // pred_region
      %30 = vsyncadd [#allocation4], 0
      %s32 = sshll.u32 [#allocation5], 4
      %s33 = int_to_ptr.vmem [resolvable:$true] %s32
      %s34 = sshll.u32 %s1, 4
      %s35 = int_to_ptr.hbm [resolvable:$true] %s34
      %37 = dma.vmem_to_hbm [thread:$0]  %s33, 128, %s35, [#allocation4]
    $region13: #{tpu_custom_call.1} parent=1 // pred_fallthru
      _
    // Predicated region
    $region14: #{tpu_custom_call.1} parent=1 // pred_check
      _
    $region15: #{tpu_custom_call.1} parent=1 // pred_check_branch
      %39 = sbr.rel (0) target = $region17
    $region16: #{tpu_custom_call.1} parent=1 // pred_region
      %41 = dma.done [#allocation4], 128
    $region17: #{tpu_custom_call.1} parent=1 // pred_fallthru
      _
    %42 = vsyncpa [#allocation3], 1
    %43 = vsyncpa [#allocation4], 1

// kernel: tpu_custom_call.1
$region0: #{tpu_custom_call.1}
  #allocation0 [shape = 'u32[]', space=smem, size = 0x4, offset = 0x4, fixed_abs, tag = 'smem constant byte address 0x4 - core index']
  #allocation1 [shape = 'u32[72,128]{1,0:T(1,128)}', space=vmem, size = 0x9000, scoped, tag = 'internal scratch']
  #allocation2 [shape = 'f32[4,256]{1,0:T(4,128)}', space=vmem, size = 0x1000, scoped, tag = 'scratch operand']
  %s0 = inlined_call_operand.vmem [shape: f32[2,32,8], index: 0, kind: input, shape index: {}]
  %s1 = inlined_call_operand.vmem [shape: f32[2,4,256], index: 1, kind: input, shape index: {}]
  %s2 = inlined_call_operand.vmem [shape: f32[8,16], index: 2, kind: input, shape index: {}]
  %s3 = inlined_call_operand.vmem [shape: f32[4,16,8], index: 3, kind: input, shape index: {}]
  %s4 = inlined_call_operand.vmem [shape: f32[4,1], index: 4, kind: input, shape index: {}]
  %s5 = inlined_call_operand.vmem [shape: f32[4,1], index: 5, kind: input, shape index: {}]
  %s6 = inlined_call_operand.vmem [shape: f32[9,4,4], index: 6, kind: input, shape index: {}]
  %s7 = inlined_call_operand.vmem [shape: f32[9,256], index: 7, kind: input, shape index: {}]
  %s8 = inlined_call_operand.hbm [shape: f32[2,4,256], index: 8, kind: output, shape index: {}]
  %s9 = sld [smem:[#allocation0]]
  $region65: #{tpu_custom_call.1} parent=0
    _
  %s11 = ssub.s32 1, %s9
  %s12 = scalar_select 0, %s11, %s9
  $region1: #{tpu_custom_call.1} parent=0
    #allocation3 [shape = 'u8[8192]{0}', space=vmem, size = 0x2000, scoped, tag = 'output window, operand 0']
    #allocation4 [shape = 's32[2]{0}', space=sflag, size = 0x8, scoped, tag = 'scoped memory for tpu_custom_call.1']
    %13 = vsyncpa [#allocation4], 0
    %s14 = scalar_lea.sflag [#allocation4], 1
    %15 = vsyncpa %s14, 0
    loop: start=0, step=1, limit=4
    $region2: #{tpu_custom_call.1} parent=1 // loop_pre_header
      _
    $region3: #{tpu_custom_call.1} parent=1 // loop_header
      %s17 = sphi 0, %s21
      %p18 = scmp.ge.s32.totalorder %s17, 4
      %s27 = sphi 0, %s29
      %s30 = sphi 0, %s27
      %s31 = sphi 0, %s30
      %s47 = sphi 0, %s31
      %s53 = sphi 0, %s55
      %s56 = sphi 0, %s53
      %s57 = sphi 0, %s56
      %s73 = sphi 0, %s57
      %s77 = sphi 0, %s77
      %s79 = sphi 0, %s77
      %s80 = sphi 0, %s79
      %s94 = sphi 0, %s80
      %s98 = sphi 0, %s98
      %s100 = sphi 0, %s98
      %s101 = sphi 0, %s100
      %s115 = sphi 0, %s101
      %s119 = sphi 0, %s119
      %s121 = sphi 0, %s119
      %s122 = sphi 0, %s121
      %s136 = sphi 0, %s122
      %s140 = sphi 0, %s140
      %s142 = sphi 0, %s140
      %s143 = sphi 0, %s142
      %s157 = sphi 0, %s143
      %s161 = sphi 0, %s161
      %s163 = sphi 0, %s161
      %s164 = sphi 0, %s163
      %s178 = sphi 0, %s164
      %s182 = sphi 0, %s182
      %s184 = sphi 0, %s182
      %s185 = sphi 0, %s184
      %s199 = sphi 0, %s185
      %s205 = sphi 0, %s207
      %s208 = sphi 0, %s205
      %s209 = sphi 0, %s208
      %s225 = sphi 0, %s209
    $region4: #{tpu_custom_call.1} parent=1 // loop_header_branch
      %20 = sbr.rel (%p18) target = $region8
    $region5: #{tpu_custom_call.1} parent=1 // loop_body
      %s22 = ssub.s32 %s17, 1
      %s23 = ssub.s32 %s17, 2
      %s24 = sadd.s32 %s17, 1
      %s25 = ssub.s32 %s17, %s24
      %p26 = scmp.eq.s32.totalorder %s25, 0
      %s28 = sadd.s32 %s27, 1
      %s29 = scalar_select %p26, %s27, %s28
      %p32 = pneg %p26
      %p33 = scmp.eq.s32.totalorder %s17, 1
      %p34 = por %p32, %p33
      %p35 = scmp.ne.s32.totalorder %s27, %s30
      %p36 = scmp.eq.s32.totalorder %s17, 0
      %p37 = por %p35, %p36
      %p38 = scmp.ne.s32.totalorder %s27, %s30
      %p39 = scmp.eq.s32.totalorder %s22, 1
      %p40 = por %p38, %p39
      %p41 = scmp.ne.s32.totalorder %s30, %s31
      %p42 = scmp.eq.s32.totalorder %s22, 0
      %p43 = por %p41, %p42
      %p44 = scmp.ne.s32.totalorder %s30, %s31
      %p45 = scmp.eq.s32.totalorder %s23, 1
      %p46 = por %p44, %p45
      %p48 = scmp.ne.s32.totalorder %s31, %s47
      %p49 = scmp.eq.s32.totalorder %s23, 0
      %p50 = por %p48, %p49
      %s51 = ssub.s32 %s17, %s24
      %p52 = scmp.eq.s32.totalorder %s51, 0
      %s54 = sadd.s32 %s53, 1
      %s55 = scalar_select %p52, %s53, %s54
      %p58 = pneg %p52
      %p59 = scmp.eq.s32.totalorder %s17, 1
      %p60 = por %p58, %p59
      %p61 = scmp.ne.s32.totalorder %s53, %s56
      %p62 = scmp.eq.s32.totalorder %s17, 0
      %p63 = por %p61, %p62
      %p64 = scmp.ne.s32.totalorder %s53, %s56
      %p65 = scmp.eq.s32.totalorder %s22, 1
      %p66 = por %p64, %p65
      %p67 = scmp.ne.s32.totalorder %s56, %s57
      %p68 = scmp.eq.s32.totalorder %s22, 0
      %p69 = por %p67, %p68
      %p70 = scmp.ne.s32.totalorder %s56, %s57
      %p71 = scmp.eq.s32.totalorder %s23, 1
      %p72 = por %p70, %p71
      %p74 = scmp.ne.s32.totalorder %s57, %s73
      %p75 = scmp.eq.s32.totalorder %s23, 0
      %p76 = por %p74, %p75
      %s78 = sadd.s32 %s77, 1
      %p81 = scmp.eq.s32.totalorder %s17, 1
      %p82 = scmp.ne.s32.totalorder %s77, %s79
      %p83 = scmp.eq.s32.totalorder %s17, 0
      %p84 = por %p82, %p83
      %p85 = scmp.ne.s32.totalorder %s77, %s79
      %p86 = scmp.eq.s32.totalorder %s22, 1
      %p87 = por %p85, %p86
      %p88 = scmp.ne.s32.totalorder %s79, %s80
      %p89 = scmp.eq.s32.totalorder %s22, 0
      %p90 = por %p88, %p89
      %p91 = scmp.ne.s32.totalorder %s79, %s80
      %p92 = scmp.eq.s32.totalorder %s23, 1
      %p93 = por %p91, %p92
      %p95 = scmp.ne.s32.totalorder %s80, %s94
      %p96 = scmp.eq.s32.totalorder %s23, 0
      %p97 = por %p95, %p96
      %s99 = sadd.s32 %s98, 1
      %p102 = scmp.eq.s32.totalorder %s17, 1
      %p103 = scmp.ne.s32.totalorder %s98, %s100
      %p104 = scmp.eq.s32.totalorder %s17, 0
      %p105 = por %p103, %p104
      %p106 = scmp.ne.s32.totalorder %s98, %s100
      %p107 = scmp.eq.s32.totalorder %s22, 1
      %p108 = por %p106, %p107
      %p109 = scmp.ne.s32.totalorder %s100, %s101
      %p110 = scmp.eq.s32.totalorder %s22, 0
      %p111 = por %p109, %p110
      %p112 = scmp.ne.s32.totalorder %s100, %s101
      %p113 = scmp.eq.s32.totalorder %s23, 1
      %p114 = por %p112, %p113
      %p116 = scmp.ne.s32.totalorder %s101, %s115
      %p117 = scmp.eq.s32.totalorder %s23, 0
      %p118 = por %p116, %p117
      %s120 = sadd.s32 %s119, 1
      %p123 = scmp.eq.s32.totalorder %s17, 1
      %p124 = scmp.ne.s32.totalorder %s119, %s121
      %p125 = scmp.eq.s32.totalorder %s17, 0
      %p126 = por %p124, %p125
      %p127 = scmp.ne.s32.totalorder %s119, %s121
      %p128 = scmp.eq.s32.totalorder %s22, 1
      %p129 = por %p127, %p128
      %p130 = scmp.ne.s32.totalorder %s121, %s122
      %p131 = scmp.eq.s32.totalorder %s22, 0
      %p132 = por %p130, %p131
      %p133 = scmp.ne.s32.totalorder %s121, %s122
      %p134 = scmp.eq.s32.totalorder %s23, 1
      %p135 = por %p133, %p134
      %p137 = scmp.ne.s32.totalorder %s122, %s136
      %p138 = scmp.eq.s32.totalorder %s23, 0
      %p139 = por %p137, %p138
      %s141 = sadd.s32 %s140, 1
      %p144 = scmp.eq.s32.totalorder %s17, 1
      %p145 = scmp.ne.s32.totalorder %s140, %s142
      %p146 = scmp.eq.s32.totalorder %s17, 0
      %p147 = por %p145, %p146
      %p148 = scmp.ne.s32.totalorder %s140, %s142
      %p149 = scmp.eq.s32.totalorder %s22, 1
      %p150 = por %p148, %p149
      %p151 = scmp.ne.s32.totalorder %s142, %s143
      %p152 = scmp.eq.s32.totalorder %s22, 0
      %p153 = por %p151, %p152
      %p154 = scmp.ne.s32.totalorder %s142, %s143
      %p155 = scmp.eq.s32.totalorder %s23, 1
      %p156 = por %p154, %p155
      %p158 = scmp.ne.s32.totalorder %s143, %s157
      %p159 = scmp.eq.s32.totalorder %s23, 0
      %p160 = por %p158, %p159
      %s162 = sadd.s32 %s161, 1
      %p165 = scmp.eq.s32.totalorder %s17, 1
      %p166 = scmp.ne.s32.totalorder %s161, %s163
      %p167 = scmp.eq.s32.totalorder %s17, 0
      %p168 = por %p166, %p167
      %p169 = scmp.ne.s32.totalorder %s161, %s163
      %p170 = scmp.eq.s32.totalorder %s22, 1
      %p171 = por %p169, %p170
      %p172 = scmp.ne.s32.totalorder %s163, %s164
      %p173 = scmp.eq.s32.totalorder %s22, 0
      %p174 = por %p172, %p173
      %p175 = scmp.ne.s32.totalorder %s163, %s164
      %p176 = scmp.eq.s32.totalorder %s23, 1
      %p177 = por %p175, %p176
      %p179 = scmp.ne.s32.totalorder %s164, %s178
      %p180 = scmp.eq.s32.totalorder %s23, 0
      %p181 = por %p179, %p180
      %s183 = sadd.s32 %s182, 1
      %p186 = scmp.eq.s32.totalorder %s17, 1
      %p187 = scmp.ne.s32.totalorder %s182, %s184
      %p188 = scmp.eq.s32.totalorder %s17, 0
      %p189 = por %p187, %p188
      %p190 = scmp.ne.s32.totalorder %s182, %s184
      %p191 = scmp.eq.s32.totalorder %s22, 1
      %p192 = por %p190, %p191
      %p193 = scmp.ne.s32.totalorder %s184, %s185
      %p194 = scmp.eq.s32.totalorder %s22, 0
      %p195 = por %p193, %p194
      %p196 = scmp.ne.s32.totalorder %s184, %s185
      %p197 = scmp.eq.s32.totalorder %s23, 1
      %p198 = por %p196, %p197
      %p200 = scmp.ne.s32.totalorder %s185, %s199
      %p201 = scmp.eq.s32.totalorder %s23, 0
      %p202 = por %p200, %p201
      %s203 = ssub.s32 %s17, %s24
      %p204 = scmp.eq.s32.totalorder %s203, 0
      %s206 = sadd.s32 %s205, 1
      %s207 = scalar_select %p204, %s205, %s206
      %p210 = pneg %p204
      %p211 = scmp.eq.s32.totalorder %s17, 1
      %p212 = por %p210, %p211
      %p213 = scmp.ne.s32.totalorder %s205, %s208
      %p214 = scmp.eq.s32.totalorder %s17, 0
      %p215 = por %p213, %p214
      %p216 = scmp.ne.s32.totalorder %s205, %s208
      %p217 = scmp.eq.s32.totalorder %s22, 1
      %p218 = por %p216, %p217
      %p219 = scmp.ne.s32.totalorder %s208, %s209
      %p220 = scmp.eq.s32.totalorder %s22, 0
      %p221 = por %p219, %p220
      %p222 = scmp.ne.s32.totalorder %s208, %s209
      %p223 = scmp.eq.s32.totalorder %s23, 1
      %p224 = por %p222, %p223
      %p226 = scmp.ne.s32.totalorder %s209, %s225
      %p227 = scmp.eq.s32.totalorder %s23, 0
      %p228 = por %p226, %p227
      %p229 = scmp.le.s32.totalorder 1, %s17
      %p230 = scmp.lt.s32.totalorder %s17, 3
      %p231 = pnand %p229, %p230
      %p232 = pneg %p231
      // Predicated region
      $region9: #{tpu_custom_call.1} parent=5 // pred_check
        _
      $region10: #{tpu_custom_call.1} parent=5 // pred_check_branch
        %234 = sbr.rel (%p231) target = $region12
      $region11: #{tpu_custom_call.1} parent=5 // pred_region
        %s235 = ssub.s32 %s17, 1
        // Predicated region
        $region13: #{tpu_custom_call.1} parent=11 // pred_check
          %p236 = pneg %p90
        $region14: #{tpu_custom_call.1} parent=11 // pred_check_branch
          %238 = sbr.rel (%p236) target = $region16
        $region15: #{tpu_custom_call.1} parent=11 // pred_region
          _
        $region16: #{tpu_custom_call.1} parent=11 // pred_fallthru
          _
        // Predicated region
        $region17: #{tpu_custom_call.1} parent=11 // pred_check
          %p239 = pneg %p111
        $region18: #{tpu_custom_call.1} parent=11 // pred_check_branch
          %241 = sbr.rel (%p239) target = $region20
        $region19: #{tpu_custom_call.1} parent=11 // pred_region
          _
        $region20: #{tpu_custom_call.1} parent=11 // pred_fallthru
          _
        // Predicated region
        $region21: #{tpu_custom_call.1} parent=11 // pred_check
          %p242 = pneg %p132
        $region22: #{tpu_custom_call.1} parent=11 // pred_check_branch
          %244 = sbr.rel (%p242) target = $region24
        $region23: #{tpu_custom_call.1} parent=11 // pred_region
          _
        $region24: #{tpu_custom_call.1} parent=11 // pred_fallthru
          _
        // Predicated region
        $region25: #{tpu_custom_call.1} parent=11 // pred_check
          %p245 = pneg %p153
        $region26: #{tpu_custom_call.1} parent=11 // pred_check_branch
          %247 = sbr.rel (%p245) target = $region28
        $region27: #{tpu_custom_call.1} parent=11 // pred_region
          _
        $region28: #{tpu_custom_call.1} parent=11 // pred_fallthru
          _
        // Predicated region
        $region29: #{tpu_custom_call.1} parent=11 // pred_check
          %p248 = pneg %p174
        $region30: #{tpu_custom_call.1} parent=11 // pred_check_branch
          %250 = sbr.rel (%p248) target = $region32
        $region31: #{tpu_custom_call.1} parent=11 // pred_region
          _
        $region32: #{tpu_custom_call.1} parent=11 // pred_fallthru
          _
        // Predicated region
        $region33: #{tpu_custom_call.1} parent=11 // pred_check
          %p251 = pneg %p195
        $region34: #{tpu_custom_call.1} parent=11 // pred_check_branch
          %253 = sbr.rel (%p251) target = $region36
        $region35: #{tpu_custom_call.1} parent=11 // pred_region
          _
        $region36: #{tpu_custom_call.1} parent=11 // pred_fallthru
          _
      $region12: #{tpu_custom_call.1} parent=5 // pred_fallthru
        _
      %p254 = scmp.lt.s32.totalorder %s17, 2
      // Predicated region
      $region37: #{tpu_custom_call.1} parent=5 // pred_check
        %p255 = pneg %p254
      $region38: #{tpu_custom_call.1} parent=5 // pred_check_branch
        %257 = sbr.rel (%p255) target = $region40
      $region39: #{tpu_custom_call.1} parent=5 // pred_region
        // Predicated region
        $region41: #{tpu_custom_call.1} parent=39 // pred_check
          %p258 = pneg %p37
        $region42: #{tpu_custom_call.1} parent=39 // pred_check_branch
          %260 = sbr.rel (%p258) target = $region44
        $region43: #{tpu_custom_call.1} parent=39 // pred_region
          %p261 = scmp.lt.s32.totalorder %s17, 1
          %s262 = scalar_select %p261, %s17, 1
          %s263 = smul.addr %s262, 4
          %s264 = smul.addr %s263, 8
          %s265 = scalar_lea.vmem %s0, %s264
        $region44: #{tpu_custom_call.1} parent=39 // pred_fallthru
          _
        // Predicated region
        $region45: #{tpu_custom_call.1} parent=39 // pred_check
          %p266 = pneg %p63
        $region46: #{tpu_custom_call.1} parent=39 // pred_check_branch
          %268 = sbr.rel (%p266) target = $region48
        $region47: #{tpu_custom_call.1} parent=39 // pred_region
          %p269 = scmp.lt.s32.totalorder %s17, 1
          %s270 = scalar_select %p269, %s17, 1
          %s271 = smul.addr %s270, 2
          %s272 = smul.addr %s271, 4
          %s273 = scalar_lea.vmem %s1, %s272
        $region48: #{tpu_custom_call.1} parent=39 // pred_fallthru
          _
      $region40: #{tpu_custom_call.1} parent=5 // pred_fallthru
        _
      %p274 = scmp.le.s32.totalorder 1, %s17
      %p275 = scmp.lt.s32.totalorder %s17, 3
      %p276 = pnand %p274, %p275
      %p277 = pneg %p276
      // Predicated region
      $region49: #{tpu_custom_call.1} parent=5 // pred_check
        _
      $region50: #{tpu_custom_call.1} parent=5 // pred_check_branch
        %279 = sbr.rel (%p276) target = $region52
      $region51: #{tpu_custom_call.1} parent=5 // pred_region
        %s280 = ssub.s32 %s17, 1
        %p281 = scmp.lt.s32.totalorder %s22, 1
        %s282 = scalar_select %p281, %s22, 1
        %s283 = smul.addr %s282, 4
        %s284 = smul.addr %s283, 8
        %s285 = scalar_lea.vmem %s0, %s284
        %p286 = pneg %p43
        %p287 = pneg %p40
        %p288 = scmp.lt.s32.totalorder %s22, 1
        %s289 = scalar_select %p288, %s22, 1
        %s290 = smul.addr %s289, 2
        %s291 = smul.addr %s290, 4
        %s292 = scalar_lea.vmem %s1, %s291
        %p293 = pneg %p69
        %p294 = pneg %p66
        %p295 = pneg %p90
        %p296 = pneg %p87
        %p297 = pneg %p111
        %p298 = pneg %p108
        %p299 = pneg %p132
        %p300 = pneg %p129
        %p301 = pneg %p153
        %p302 = pneg %p150
        %p303 = pneg %p174
        %p304 = pneg %p171
        %p305 = pneg %p195
        %p306 = pneg %p192
        %p307 = pneg %p221
        %p308 = pneg %p218
        %s309 = sand.u32 %s208, 1
        %s310 = scalar_lea.sflag [#allocation4], %s309
        %s311 = sand.u32 %s208, 1
        %s312 = smul.addr %s311, 8
        %s313 = scalar_lea.vmem [#allocation3], %s312
        %p314 = scmp.lt.s32.totalorder %s22, 1
        %s315 = scalar_select %p314, %s22, 1
        %s316 = smul.addr %s315, 4
        %s317 = smul.addr %s316, 8
        %s318 = scalar_lea.vmem %s0, %s317
        %p319 = scmp.lt.s32.totalorder %s22, 1
        %s320 = scalar_select %p319, %s22, 1
        %s321 = smul.addr %s320, 2
        %s322 = smul.addr %s321, 4
        %s323 = scalar_lea.vmem %s1, %s322
        %v324 = vld [vmem:[%s318] sm:$0xff]
        %v325 = vld [vmem:[%s318 + $0x8] sm:$0xff]
        %v326 = vld [vmem:[%s318 + $0x10] sm:$0xff]
        %v327 = vld [vmem:[%s318 + $0x18] sm:$0xff]
        %v328 = vld [vmem:[%s2] sm:$0xff]
        %vm329 = vcmask 64512
        %v331 = vsel %vm329, %v324, 0
        %v334 = vsel %vm329, %v325, 0
        %v337 = vsel %vm329, %v326, 0
        %v340 = vsel %vm329, %v327, 0
        %342 = vmatpush.msra.mxu0 0.0
        %343 = vmatpush.msra.mxu0 0.0
        %344 = vmatpush.msra.mxu0 0.0
        %345 = vmatpush.msra.mxu0 0.0
        %346 = vmatpush.msra.mxu0 0.0
        %347 = vmatpush.msra.mxu0 0.0
        %348 = vmatpush.msra.mxu0 0.0
        %349 = vmatpush.msra.mxu0 0.0
        %350 = vmatpush.msra.mxu0 0.0
        %351 = vmatpush.msra.mxu0 0.0
        %352 = vmatpush.msra.mxu0 0.0
        %353 = vmatpush.msra.mxu0 0.0
        %354 = vmatpush.msra.mxu0 0.0
        %355 = vmatpush.msra.mxu0 0.0
        %356 = vmatpush.msra.mxu0 0.0
        %357 = vmatpush.msra.mxu0 %v328
        %358 = vmatmul.f32.gmra.mxu0 %v331
        %v359 = vpop.f32.mrf.mxu0
        %v360 = vadd.f32 0.0, %v359
        %361 = vmatmul.f32.gmra.mxu0 %v334
        %v362 = vpop.f32.mrf.mxu0
        %v363 = vadd.f32 0.0, %v362
        %364 = vmatmul.f32.gmra.mxu0 %v337
        %v365 = vpop.f32.mrf.mxu0
        %v366 = vadd.f32 0.0, %v365
        %367 = vmatmul.f32.gmra.mxu0 %v340
        %v368 = vpop.f32.mrf.mxu0
        %v369 = vadd.f32 0.0, %v368
        %370 = vdwg.mxu0
        %v371 = vld [vmem:[%s3] sm:$0xff]
        %v372 = vld [vmem:[%s3 + $0x8] sm:$0xff]
        %v373 = vld [vmem:[%s3 + $0x10] sm:$0xff]
        %v374 = vld [vmem:[%s3 + $0x18] sm:$0xff]
        %v375 = vld [vmem:[%s3 + $0x20] sm:$0xff]
        %v376 = vld [vmem:[%s3 + $0x28] sm:$0xff]
        %v377 = vld [vmem:[%s3 + $0x30] sm:$0xff]
        %v378 = vld [vmem:[%s3 + $0x38] sm:$0xff]
        %v380 = vsel %vm329, %v371, 0
        %v383 = vsel %vm329, %v372, 0
        %385 = vmatpush.msra.mxu0 0.0
        %386 = vmatpush.msra.mxu0 0.0
        %387 = vmatpush.msra.mxu0 0.0
        %388 = vmatpush.msra.mxu0 0.0
        %389 = vmatpush.msra.mxu0 0.0
        %390 = vmatpush.msra.mxu0 0.0
        %391 = vmatpush.msra.mxu0 0.0
        %392 = vmatpush.msra.mxu0 0.0
        %393 = vmatpush.msra.mxu0 0.0
        %394 = vmatpush.msra.mxu0 0.0
        %395 = vmatpush.msra.mxu0 0.0
        %396 = vmatpush.msra.mxu0 0.0
        %397 = vmatpush.msra.mxu0 0.0
        %398 = vmatpush.msra.mxu0 0.0
        %399 = vmatpush.msra.mxu0 0.0
        %400 = vmatpush.msra.mxu0 %v360
        %401 = vmatmul.f32.gmra.mxu0 %v380
        %v402 = vpop.f32.mrf.mxu0
        %v403 = vadd.f32 0.0, %v402
        %404 = vmatmul.f32.gmra.mxu0 %v383
        %v405 = vpop.f32.mrf.mxu0
        %v406 = vadd.f32 0.0, %v405
        %407 = vdwg.mxu0
        %v409 = vsel %vm329, %v373, 0
        %v412 = vsel %vm329, %v374, 0
        %414 = vmatpush.msra.mxu0 0.0
        %415 = vmatpush.msra.mxu0 0.0
        %416 = vmatpush.msra.mxu0 0.0
        %417 = vmatpush.msra.mxu0 0.0
        %418 = vmatpush.msra.mxu0 0.0
        %419 = vmatpush.msra.mxu0 0.0
        %420 = vmatpush.msra.mxu0 0.0
        %421 = vmatpush.msra.mxu0 0.0
        %422 = vmatpush.msra.mxu0 0.0
        %423 = vmatpush.msra.mxu0 0.0
        %424 = vmatpush.msra.mxu0 0.0
        %425 = vmatpush.msra.mxu0 0.0
        %426 = vmatpush.msra.mxu0 0.0
        %427 = vmatpush.msra.mxu0 0.0
        %428 = vmatpush.msra.mxu0 0.0
        %429 = vmatpush.msra.mxu0 %v363
        %430 = vmatmul.f32.gmra.mxu0 %v409
        %v431 = vpop.f32.mrf.mxu0
        %v432 = vadd.f32 0.0, %v431
        %433 = vmatmul.f32.gmra.mxu0 %v412
        %v434 = vpop.f32.mrf.mxu0
        %v435 = vadd.f32 0.0, %v434
        %436 = vdwg.mxu0
        %v438 = vsel %vm329, %v375, 0
        %v441 = vsel %vm329, %v376, 0
        %443 = vmatpush.msra.mxu0 0.0
        %444 = vmatpush.msra.mxu0 0.0
        %445 = vmatpush.msra.mxu0 0.0
        %446 = vmatpush.msra.mxu0 0.0
        %447 = vmatpush.msra.mxu0 0.0
        %448 = vmatpush.msra.mxu0 0.0
        %449 = vmatpush.msra.mxu0 0.0
        %450 = vmatpush.msra.mxu0 0.0
        %451 = vmatpush.msra.mxu0 0.0
        %452 = vmatpush.msra.mxu0 0.0
        %453 = vmatpush.msra.mxu0 0.0
        %454 = vmatpush.msra.mxu0 0.0
        %455 = vmatpush.msra.mxu0 0.0
        %456 = vmatpush.msra.mxu0 0.0
        %457 = vmatpush.msra.mxu0 0.0
        %458 = vmatpush.msra.mxu0 %v366
        %459 = vmatmul.f32.gmra.mxu0 %v438
        %v460 = vpop.f32.mrf.mxu0
        %v461 = vadd.f32 0.0, %v460
        %462 = vmatmul.f32.gmra.mxu0 %v441
        %v463 = vpop.f32.mrf.mxu0
        %v464 = vadd.f32 0.0, %v463
        %465 = vdwg.mxu0
        %v467 = vsel %vm329, %v377, 0
        %v470 = vsel %vm329, %v378, 0
        %472 = vmatpush.msra.mxu0 0.0
        %473 = vmatpush.msra.mxu0 0.0
        %474 = vmatpush.msra.mxu0 0.0
        %475 = vmatpush.msra.mxu0 0.0
        %476 = vmatpush.msra.mxu0 0.0
        %477 = vmatpush.msra.mxu0 0.0
        %478 = vmatpush.msra.mxu0 0.0
        %479 = vmatpush.msra.mxu0 0.0
        %480 = vmatpush.msra.mxu0 0.0
        %481 = vmatpush.msra.mxu0 0.0
        %482 = vmatpush.msra.mxu0 0.0
        %483 = vmatpush.msra.mxu0 0.0
        %484 = vmatpush.msra.mxu0 0.0
        %485 = vmatpush.msra.mxu0 0.0
        %486 = vmatpush.msra.mxu0 0.0
        %487 = vmatpush.msra.mxu0 %v369
        %488 = vmatmul.f32.gmra.mxu0 %v467
        %v489 = vpop.f32.mrf.mxu0
        %v490 = vadd.f32 0.0, %v489
        %491 = vmatmul.f32.gmra.mxu0 %v470
        %v492 = vpop.f32.mrf.mxu0
        %v493 = vadd.f32 0.0, %v492
        %494 = vdwg.mxu0
        %v495 = vld [vmem:[%s323] sm:$0xff]
        %v496 = vld [vmem:[%s4] sm:$0xf]
        %v497 = vld [vmem:[%s5] sm:$0xf]
        %499 = vst [vmem:[#allocation1] ss:$2 sm:$0xff] %v495
        %v500 = vld.sshfl [vmem:[#allocation1] sm:$0xff pattern:$0x75316420]
        %v501 = vrot.slane %v500, 1
        %v502 = vrot.slane %v500, 2
        %v503 = vrot.slane %v500, 3
        %v508 = vadd.f32 %v403, %v500
        %v509 = vadd.f32 %v432, %v501
        %v510 = vadd.f32 %v461, %v502
        %v511 = vadd.f32 %v490, %v503
        %513 = vset.pattern.permute.xlu0 0
        %514 = vperm.xlu0 %513, %v496
        %v515 = vpop.permute.xlu0 %514
        %v516 = vrot.slane %v515, 1
        %v517 = vrot.slane %v515, 2
        %v518 = vrot.slane %v515, 3
        %v523 = vmul.f32 %v508, %v515
        %v524 = vmul.f32 %v509, %v516
        %v525 = vmul.f32 %v510, %v517
        %v526 = vmul.f32 %v511, %v518
        %528 = vset.pattern.permute.xlu0 0
        %529 = vperm.xlu0 %528, %v497
        %v530 = vpop.permute.xlu0 %529
        %v531 = vrot.slane %v530, 1
        %v532 = vrot.slane %v530, 2
        %v533 = vrot.slane %v530, 3
        %v538 = vadd.f32 %v523, %v530
        %v539 = vadd.f32 %v524, %v531
        %v540 = vadd.f32 %v525, %v532
        %v541 = vadd.f32 %v526, %v533
        %v542 = vmax.f32 %v538, 0.0
        %v543 = vmax.f32 %v539, 0.0
        %v544 = vmax.f32 %v540, 0.0
        %v545 = vmax.f32 %v541, 0.0
        %v550 = vrot.slane %v543, 7
        %vm551 = vcmask 1041409
        %v552 = vsel %vm551, %v550, %v542
        %vm553 = vcmask 1045509
        %v554 = vsel %vm553, %v550, %v552
        %v555 = vrot.slane %v544, 6
        %vm556 = vcmask 1042434
        %v557 = vsel %vm556, %v555, %v554
        %vm558 = vcmask 1046534
        %v559 = vsel %vm558, %v555, %v557
        %v560 = vrot.slane %v545, 5
        %vm561 = vcmask 1043459
        %v562 = vsel %vm561, %v560, %v559
        %vm563 = vcmask 1047559
        %v564 = vsel %vm563, %v560, %v562
        %vm566 = vcmask 125952
        %567 = vst.msk [vmem:[#allocation2] sm:$0xf] %vm566, %v564
        %568 = vst [vmem:[#allocation1] ss:$2 sm:$0xff] %v495
        %v569 = vld.sshfl [vmem:[#allocation1] sm:$0xff pattern:$0x75316420]
        %v570 = vrot.slane %v569, 7
        %v571 = vrot.slane %v569, 1
        %v572 = vrot.slane %v569, 2
        %573 = vrot.lane.b32.xlu0 %v570, 112
        %v574 = vpop.permute.xlu0 %573
        %575 = vrot.lane.b32.xlu0 %v569, 112
        %v576 = vpop.permute.xlu0 %575
        %577 = vrot.lane.b32.xlu0 %v571, 112
        %v578 = vpop.permute.xlu0 %577
        %579 = vrot.lane.b32.xlu0 %v572, 112
        %v580 = vpop.permute.xlu0 %579
        %v585 = vadd.f32 %v403, %v574
        %v586 = vadd.f32 %v432, %v576
        %v587 = vadd.f32 %v461, %v578
        %v588 = vadd.f32 %v490, %v580
        %v589 = vrot.slane %v515, 7
        %v591 = vmul.f32 %v585, %v589
        %v592 = vmul.f32 %v586, %v515
        %v593 = vmul.f32 %v587, %v516
        %v594 = vmul.f32 %v588, %v517
        %v595 = vrot.slane %v530, 7
        %v597 = vadd.f32 %v591, %v595
        %v598 = vadd.f32 %v592, %v530
        %v599 = vadd.f32 %v593, %v531
        %v600 = vadd.f32 %v594, %v532
        %v601 = vmax.f32 %v597, 0.0
        %v602 = vmax.f32 %v598, 0.0
        %v603 = vmax.f32 %v599, 0.0
        %v604 = vmax.f32 %v600, 0.0
        %v609 = vrot.slane %v601, 1
        %v610 = vsel %vm551, %v602, %v609
        %v611 = vsel %vm553, %v602, %v610
        %v612 = vrot.slane %v603, 7
        %v613 = vsel %vm556, %v612, %v611
        %v614 = vsel %vm558, %v612, %v613
        %v615 = vrot.slane %v604, 6
        %v616 = vsel %vm561, %v615, %v614
        %v617 = vsel %vm563, %v615, %v616
        %618 = vrot.lane.b32.xlu0 %v617, 16
        %v619 = vpop.permute.xlu0 %618
        %vm621 = vcmask 257152
        %622 = vst.msk [vmem:[#allocation2] sm:$0xf] %vm621, %v619
        %623 = vst [vmem:[#allocation1] ss:$2 sm:$0xff] %v495
        %v624 = vld.sshfl [vmem:[#allocation1] sm:$0xff pattern:$0x75316420]
        %v625 = vrot.slane %v624, 6
        %v626 = vrot.slane %v624, 7
        %v627 = vrot.slane %v624, 1
        %628 = vrot.lane.b32.xlu0 %v625, 96
        %v629 = vpop.permute.xlu0 %628
        %630 = vrot.lane.b32.xlu0 %v626, 96
        %v631 = vpop.permute.xlu0 %630
        %632 = vrot.lane.b32.xlu0 %v624, 96
        %v633 = vpop.permute.xlu0 %632
        %634 = vrot.lane.b32.xlu0 %v627, 96
        %v635 = vpop.permute.xlu0 %634
        %v640 = vadd.f32 %v403, %v629
        %v641 = vadd.f32 %v432, %v631
        %v642 = vadd.f32 %v461, %v633
        %v643 = vadd.f32 %v490, %v635
        %v644 = vrot.slane %v515, 6
        %v646 = vmul.f32 %v640, %v644
        %v647 = vmul.f32 %v641, %v589
        %v648 = vmul.f32 %v642, %v515
        %v649 = vmul.f32 %v643, %v516
        %v650 = vrot.slane %v530, 6
        %v652 = vadd.f32 %v646, %v650
        %v653 = vadd.f32 %v647, %v595
        %v654 = vadd.f32 %v648, %v530
        %v655 = vadd.f32 %v649, %v531
        %v656 = vmax.f32 %v652, 0.0
        %v657 = vmax.f32 %v653, 0.0
        %v658 = vmax.f32 %v654, 0.0
        %v659 = vmax.f32 %v655, 0.0
        %v664 = vrot.slane %v656, 2
        %v665 = vrot.slane %v657, 1
        %v666 = vsel %vm551, %v665, %v664
        %v667 = vsel %vm553, %v665, %v666
        %v668 = vsel %vm556, %v658, %v667
        %v669 = vsel %vm558, %v658, %v668
        %v670 = vrot.slane %v659, 7
        %v671 = vsel %vm561, %v670, %v669
        %v672 = vsel %vm563, %v670, %v671
        %673 = vrot.lane.b32.xlu0 %v672, 32
        %v674 = vpop.permute.xlu0 %673
        %vm676 = vcmask 388352
        %677 = vst.msk [vmem:[#allocation2] sm:$0xf] %vm676, %v674
        %678 = vst [vmem:[#allocation1] ss:$2 sm:$0xff] %v495
        %v679 = vld.sshfl [vmem:[#allocation1] sm:$0xff pattern:$0x75316420]
        %v680 = vrot.slane %v679, 5
        %v681 = vrot.slane %v679, 6
        %v682 = vrot.slane %v679, 7
        %683 = vrot.lane.b32.xlu0 %v680, 80
        %v684 = vpop.permute.xlu0 %683
        %685 = vrot.lane.b32.xlu0 %v681, 80
        %v686 = vpop.permute.xlu0 %685
        %687 = vrot.lane.b32.xlu0 %v682, 80
        %v688 = vpop.permute.xlu0 %687
        %689 = vrot.lane.b32.xlu0 %v679, 80
        %v690 = vpop.permute.xlu0 %689
        %v695 = vadd.f32 %v403, %v684
        %v696 = vadd.f32 %v432, %v686
        %v697 = vadd.f32 %v461, %v688
        %v698 = vadd.f32 %v490, %v690
        %v699 = vrot.slane %v515, 5
        %v701 = vmul.f32 %v695, %v699
        %v702 = vmul.f32 %v696, %v644
        %v703 = vmul.f32 %v697, %v589
        %v704 = vmul.f32 %v698, %v515
        %v705 = vrot.slane %v530, 5
        %v707 = vadd.f32 %v701, %v705
        %v708 = vadd.f32 %v702, %v650
        %v709 = vadd.f32 %v703, %v595
        %v710 = vadd.f32 %v704, %v530
        %v711 = vmax.f32 %v707, 0.0
        %v712 = vmax.f32 %v708, 0.0
        %v713 = vmax.f32 %v709, 0.0
        %v714 = vmax.f32 %v710, 0.0
        %v719 = vrot.slane %v711, 3
        %v720 = vrot.slane %v712, 2
        %v721 = vsel %vm551, %v720, %v719
        %v722 = vsel %vm553, %v720, %v721
        %v723 = vrot.slane %v713, 1
        %v724 = vsel %vm556, %v723, %v722
        %v725 = vsel %vm558, %v723, %v724
        %v726 = vsel %vm561, %v714, %v725
        %v727 = vsel %vm563, %v714, %v726
        %728 = vrot.lane.b32.xlu0 %v727, 48
        %v729 = vpop.permute.xlu0 %728
        %vm731 = vcmask 519552
        %732 = vst.msk [vmem:[#allocation2] sm:$0xf] %vm731, %v729
        %s733 = scalar_lea.vmem [#allocation1], 1
        %734 = vst [vmem:[%s733] ss:$2 sm:$0xff] %v495
        %v735 = vld.sshfl [vmem:[#allocation1] sm:$0xff pattern:$0x75316420]
        %v736 = vrot.slane %v735, 1
        %v737 = vrot.slane %v735, 2
        %v738 = vrot.slane %v735, 3
        %739 = vrot.lane.b32.xlu0 %v735, 64
        %v740 = vpop.permute.xlu0 %739
        %741 = vrot.lane.b32.xlu0 %v736, 64
        %v742 = vpop.permute.xlu0 %741
        %743 = vrot.lane.b32.xlu0 %v737, 64
        %v744 = vpop.permute.xlu0 %743
        %745 = vrot.lane.b32.xlu0 %v738, 64
        %v746 = vpop.permute.xlu0 %745
        %v751 = vadd.f32 %v403, %v740
        %v752 = vadd.f32 %v432, %v742
        %v753 = vadd.f32 %v461, %v744
        %v754 = vadd.f32 %v490, %v746
        %v755 = vrot.slane %v515, 4
        %v757 = vmul.f32 %v751, %v755
        %v758 = vmul.f32 %v752, %v699
        %v759 = vmul.f32 %v753, %v644
        %v760 = vmul.f32 %v754, %v589
        %v761 = vrot.slane %v530, 4
        %v763 = vadd.f32 %v757, %v761
        %v764 = vadd.f32 %v758, %v705
        %v765 = vadd.f32 %v759, %v650
        %v766 = vadd.f32 %v760, %v595
        %v767 = vmax.f32 %v763, 0.0
        %v768 = vmax.f32 %v764, 0.0
        %v769 = vmax.f32 %v765, 0.0
        %v770 = vmax.f32 %v766, 0.0
        %775 = vst.sshfl [vmem:[#allocation1] sm:$0xff pattern:$0x75316420] %v767
        %s776 = scalar_lea.vmem [#allocation1], 1
        %v777 = vld [vmem:[%s776] ss:$2 sm:$0xff]
        %778 = vst.sshfl [vmem:[#allocation1 + $0x10] sm:$0xff pattern:$0x75316420] %v768
        %s779 = scalar_lea.vmem [#allocation1], 17
        %v780 = vld [vmem:[%s779] ss:$2 sm:$0xff]
        %781 = vst.sshfl [vmem:[#allocation1 + $0x20] sm:$0xff pattern:$0x75316420] %v769
        %s782 = scalar_lea.vmem [#allocation1], 33
        %v783 = vld [vmem:[%s782] ss:$2 sm:$0xff]
        %784 = vst.sshfl [vmem:[#allocation1 + $0x30] sm:$0xff pattern:$0x75316420] %v770
        %s785 = scalar_lea.vmem [#allocation1], 49
        %v786 = vld [vmem:[%s785] ss:$2 sm:$0xff]
        %v787 = vrot.slane %v780, 7
        %v788 = vsel %vm551, %v787, %v777
        %v789 = vsel %vm553, %v787, %v788
        %v790 = vrot.slane %v783, 6
        %v791 = vsel %vm556, %v790, %v789
        %v792 = vsel %vm558, %v790, %v791
        %v793 = vrot.slane %v786, 5
        %v794 = vsel %vm561, %v793, %v792
        %v795 = vsel %vm563, %v793, %v794
        %796 = vrot.lane.b32.xlu0 %v795, 64
        %v797 = vpop.permute.xlu0 %796
        %vm799 = vcmask 650752
        %800 = vst.msk [vmem:[#allocation2] sm:$0xf] %vm799, %v797
        %801 = vst [vmem:[#allocation1] ss:$2 sm:$0xff] %v495
        %v802 = vld.sshfl [vmem:[#allocation1] sm:$0xff pattern:$0x75316420]
        %v803 = vrot.slane %v802, 3
        %v804 = vrot.slane %v802, 4
        %v805 = vrot.slane %v802, 5
        %v806 = vrot.slane %v802, 6
        %807 = vrot.lane.b32.xlu0 %v803, 48
        %v808 = vpop.permute.xlu0 %807
        %809 = vrot.lane.b32.xlu0 %v804, 48
        %v810 = vpop.permute.xlu0 %809
        %811 = vrot.lane.b32.xlu0 %v805, 48
        %v812 = vpop.permute.xlu0 %811
        %813 = vrot.lane.b32.xlu0 %v806, 48
        %v814 = vpop.permute.xlu0 %813
        %v819 = vadd.f32 %v403, %v808
        %v820 = vadd.f32 %v432, %v810
        %v821 = vadd.f32 %v461, %v812
        %v822 = vadd.f32 %v490, %v814
        %v823 = vmul.f32 %v819, %v518
        %v824 = vmul.f32 %v820, %v755
        %v825 = vmul.f32 %v821, %v699
        %v826 = vmul.f32 %v822, %v644
        %v827 = vadd.f32 %v823, %v533
        %v828 = vadd.f32 %v824, %v761
        %v829 = vadd.f32 %v825, %v705
        %v830 = vadd.f32 %v826, %v650
        %v831 = vmax.f32 %v827, 0.0
        %v832 = vmax.f32 %v828, 0.0
        %v833 = vmax.f32 %v829, 0.0
        %v834 = vmax.f32 %v830, 0.0
        %839 = vst.sshfl [vmem:[#allocation1] sm:$0xff pattern:$0x75316420] %v831
        %s840 = scalar_lea.vmem [#allocation1], 1
        %v841 = vld [vmem:[%s840] ss:$2 sm:$0xff]
        %842 = vst.sshfl [vmem:[#allocation1 + $0x10] sm:$0xff pattern:$0x75316420] %v832
        %s843 = scalar_lea.vmem [#allocation1], 17
        %v844 = vld [vmem:[%s843] ss:$2 sm:$0xff]
        %845 = vst.sshfl [vmem:[#allocation1 + $0x20] sm:$0xff pattern:$0x75316420] %v833
        %s846 = scalar_lea.vmem [#allocation1], 33
        %v847 = vld [vmem:[%s846] ss:$2 sm:$0xff]
        %848 = vst.sshfl [vmem:[#allocation1 + $0x30] sm:$0xff pattern:$0x75316420] %v834
        %s849 = scalar_lea.vmem [#allocation1], 49
        %v850 = vld [vmem:[%s849] ss:$2 sm:$0xff]
        %v851 = vrot.slane %v841, 1
        %v852 = vsel %vm551, %v844, %v851
        %v853 = vsel %vm553, %v844, %v852
        %v854 = vrot.slane %v847, 7
        %v855 = vsel %vm556, %v854, %v853
        %v856 = vsel %vm558, %v854, %v855
        %v857 = vrot.slane %v850, 6
        %v858 = vsel %vm561, %v857, %v856
        %v859 = vsel %vm563, %v857, %v858
        %860 = vrot.lane.b32.xlu0 %v859, 80
        %v861 = vpop.permute.xlu0 %860
        %vm863 = vcmask 781952
        %864 = vst.msk [vmem:[#allocation2] sm:$0xf] %vm863, %v861
        %865 = vst [vmem:[#allocation1] ss:$2 sm:$0xff] %v495
        %v866 = vld.sshfl [vmem:[#allocation1] sm:$0xff pattern:$0x75316420]
        %v867 = vrot.slane %v866, 2
        %v868 = vrot.slane %v866, 3
        %v869 = vrot.slane %v866, 4
        %v870 = vrot.slane %v866, 5
        %871 = vrot.lane.b32.xlu0 %v867, 32
        %v872 = vpop.permute.xlu0 %871
        %873 = vrot.lane.b32.xlu0 %v868, 32
        %v874 = vpop.permute.xlu0 %873
        %875 = vrot.lane.b32.xlu0 %v869, 32
        %v876 = vpop.permute.xlu0 %875
        %877 = vrot.lane.b32.xlu0 %v870, 32
        %v878 = vpop.permute.xlu0 %877
        %v883 = vadd.f32 %v403, %v872
        %v884 = vadd.f32 %v432, %v874
        %v885 = vadd.f32 %v461, %v876
        %v886 = vadd.f32 %v490, %v878
        %v887 = vmul.f32 %v883, %v517
        %v888 = vmul.f32 %v884, %v518
        %v889 = vmul.f32 %v885, %v755
        %v890 = vmul.f32 %v886, %v699
        %v891 = vadd.f32 %v887, %v532
        %v892 = vadd.f32 %v888, %v533
        %v893 = vadd.f32 %v889, %v761
        %v894 = vadd.f32 %v890, %v705
        %v895 = vmax.f32 %v891, 0.0
        %v896 = vmax.f32 %v892, 0.0
        %v897 = vmax.f32 %v893, 0.0
        %v898 = vmax.f32 %v894, 0.0
        %903 = vst.sshfl [vmem:[#allocation1] sm:$0xff pattern:$0x75316420] %v895
        %s904 = scalar_lea.vmem [#allocation1], 1
        %v905 = vld [vmem:[%s904] ss:$2 sm:$0xff]
        %906 = vst.sshfl [vmem:[#allocation1 + $0x10] sm:$0xff pattern:$0x75316420] %v896
        %s907 = scalar_lea.vmem [#allocation1], 17
        %v908 = vld [vmem:[%s907] ss:$2 sm:$0xff]
        %909 = vst.sshfl [vmem:[#allocation1 + $0x20] sm:$0xff pattern:$0x75316420] %v897
        %s910 = scalar_lea.vmem [#allocation1], 33
        %v911 = vld [vmem:[%s910] ss:$2 sm:$0xff]
        %912 = vst.sshfl [vmem:[#allocation1 + $0x30] sm:$0xff pattern:$0x75316420] %v898
        %s913 = scalar_lea.vmem [#allocation1], 49
        %v914 = vld [vmem:[%s913] ss:$2 sm:$0xff]
        %v915 = vrot.slane %v905, 2
        %v916 = vrot.slane %v908, 1
        %v917 = vsel %vm551, %v916, %v915
        %v918 = vsel %vm553, %v916, %v917
        %v919 = vsel %vm556, %v911, %v918
        %v920 = vsel %vm558, %v911, %v919
        %v921 = vrot.slane %v914, 7
        %v922 = vsel %vm561, %v921, %v920
        %v923 = vsel %vm563, %v921, %v922
        %924 = vrot.lane.b32.xlu0 %v923, 96
        %v925 = vpop.permute.xlu0 %924
        %vm927 = vcmask 913152
        %928 = vst.msk [vmem:[#allocation2] sm:$0xf] %vm927, %v925
        %929 = vst [vmem:[#allocation1] ss:$2 sm:$0xff] %v495
        %v930 = vld.sshfl [vmem:[#allocation1] sm:$0xff pattern:$0x75316420]
        %v931 = vrot.slane %v930, 1
        %v932 = vrot.slane %v930, 2
        %v933 = vrot.slane %v930, 3
        %v934 = vrot.slane %v930, 4
        %935 = vrot.lane.b32.xlu0 %v931, 16
        %v936 = vpop.permute.xlu0 %935
        %937 = vrot.lane.b32.xlu0 %v932, 16
        %v938 = vpop.permute.xlu0 %937
        %939 = vrot.lane.b32.xlu0 %v933, 16
        %v940 = vpop.permute.xlu0 %939
        %941 = vrot.lane.b32.xlu0 %v934, 16
        %v942 = vpop.permute.xlu0 %941
        %v947 = vadd.f32 %v403, %v936
        %v948 = vadd.f32 %v432, %v938
        %v949 = vadd.f32 %v461, %v940
        %v950 = vadd.f32 %v490, %v942
        %v951 = vmul.f32 %v947, %v516
        %v952 = vmul.f32 %v948, %v517
        %v953 = vmul.f32 %v949, %v518
        %v954 = vmul.f32 %v950, %v755
        %v955 = vadd.f32 %v951, %v531
        %v956 = vadd.f32 %v952, %v532
        %v957 = vadd.f32 %v953, %v533
        %v958 = vadd.f32 %v954, %v761
        %v959 = vmax.f32 %v955, 0.0
        %v960 = vmax.f32 %v956, 0.0
        %v961 = vmax.f32 %v957, 0.0
        %v962 = vmax.f32 %v958, 0.0
        %967 = vst.sshfl [vmem:[#allocation1] sm:$0xff pattern:$0x75316420] %v959
        %s968 = scalar_lea.vmem [#allocation1], 1
        %v969 = vld [vmem:[%s968] ss:$2 sm:$0xff]
        %970 = vst.sshfl [vmem:[#allocation1 + $0x10] sm:$0xff pattern:$0x75316420] %v960
        %s971 = scalar_lea.vmem [#allocation1], 17
        %v972 = vld [vmem:[%s971] ss:$2 sm:$0xff]
        %973 = vst.sshfl [vmem:[#allocation1 + $0x20] sm:$0xff pattern:$0x75316420] %v961
        %s974 = scalar_lea.vmem [#allocation1], 33
        %v975 = vld [vmem:[%s974] ss:$2 sm:$0xff]
        %976 = vst.sshfl [vmem:[#allocation1 + $0x30] sm:$0xff pattern:$0x75316420] %v962
        %s977 = scalar_lea.vmem [#allocation1], 49
        %v978 = vld [vmem:[%s977] ss:$2 sm:$0xff]
        %v979 = vrot.slane %v969, 3
        %v980 = vrot.slane %v972, 2
        %v981 = vsel %vm551, %v980, %v979
        %v982 = vsel %vm553, %v980, %v981
        %v983 = vrot.slane %v975, 1
        %v984 = vsel %vm556, %v983, %v982
        %v985 = vsel %vm558, %v983, %v984
        %v986 = vsel %vm561, %v978, %v985
        %v987 = vsel %vm563, %v978, %v986
        %988 = vrot.lane.b32.xlu0 %v987, 112
        %v989 = vpop.permute.xlu0 %988
        %vm991 = vcmask 1044352
        %992 = vst.msk [vmem:[#allocation2] sm:$0xf] %vm991, %v989
        %993 = vst [vmem:[#allocation1] ss:$2 sm:$0xff] %v495
        %v994 = vld.sshfl [vmem:[#allocation1 + $0x8] sm:$0xff pattern:$0x75316420]
        %v995 = vrot.slane %v994, 1
        %v996 = vrot.slane %v994, 2
        %v997 = vrot.slane %v994, 3
        %v1002 = vadd.f32 %v406, %v994
        %v1003 = vadd.f32 %v435, %v995
        %v1004 = vadd.f32 %v464, %v996
        %v1005 = vadd.f32 %v493, %v997
        %v1006 = vmul.f32 %v1002, %v515
        %v1007 = vmul.f32 %v1003, %v516
        %v1008 = vmul.f32 %v1004, %v517
        %v1009 = vmul.f32 %v1005, %v518
        %v1010 = vadd.f32 %v1006, %v530
        %v1011 = vadd.f32 %v1007, %v531
        %v1012 = vadd.f32 %v1008, %v532
        %v1013 = vadd.f32 %v1009, %v533
        %v1014 = vmax.f32 %v1010, 0.0
        %v1015 = vmax.f32 %v1011, 0.0
        %v1016 = vmax.f32 %v1012, 0.0
        %v1017 = vmax.f32 %v1013, 0.0
        %v1022 = vrot.slane %v1015, 7
        %v1023 = vsel %vm551, %v1022, %v1014
        %v1024 = vsel %vm553, %v1022, %v1023
        %v1025 = vrot.slane %v1016, 6
        %v1026 = vsel %vm556, %v1025, %v1024
        %v1027 = vsel %vm558, %v1025, %v1026
        %v1028 = vrot.slane %v1017, 5
        %v1029 = vsel %vm561, %v1028, %v1027
        %v1030 = vsel %vm563, %v1028, %v1029
        %1032 = vst.msk [vmem:[#allocation2 + $0x4] sm:$0xf] %vm566, %v1030
        %1033 = vst [vmem:[#allocation1] ss:$2 sm:$0xff] %v495
        %v1034 = vld.sshfl [vmem:[#allocation1 + $0x8] sm:$0xff pattern:$0x75316420]
        %v1035 = vrot.slane %v1034, 7
        %v1036 = vrot.slane %v1034, 1
        %v1037 = vrot.slane %v1034, 2
        %1038 = vrot.lane.b32.xlu0 %v1035, 112
        %v1039 = vpop.permute.xlu0 %1038
        %1040 = vrot.lane.b32.xlu0 %v1034, 112
        %v1041 = vpop.permute.xlu0 %1040
        %1042 = vrot.lane.b32.xlu0 %v1036, 112
        %v1043 = vpop.permute.xlu0 %1042
        %1044 = vrot.lane.b32.xlu0 %v1037, 112
        %v1045 = vpop.permute.xlu0 %1044
        %v1050 = vadd.f32 %v406, %v1039
        %v1051 = vadd.f32 %v435, %v1041
        %v1052 = vadd.f32 %v464, %v1043
        %v1053 = vadd.f32 %v493, %v1045
        %v1054 = vmul.f32 %v1050, %v589
        %v1055 = vmul.f32 %v1051, %v515
        %v1056 = vmul.f32 %v1052, %v516
        %v1057 = vmul.f32 %v1053, %v517
        %v1058 = vadd.f32 %v1054, %v595
        %v1059 = vadd.f32 %v1055, %v530
        %v1060 = vadd.f32 %v1056, %v531
        %v1061 = vadd.f32 %v1057, %v532
        %v1062 = vmax.f32 %v1058, 0.0
        %v1063 = vmax.f32 %v1059, 0.0
        %v1064 = vmax.f32 %v1060, 0.0
        %v1065 = vmax.f32 %v1061, 0.0
        %v1070 = vrot.slane %v1062, 1
        %v1071 = vsel %vm551, %v1063, %v1070
        %v1072 = vsel %vm553, %v1063, %v1071
        %v1073 = vrot.slane %v1064, 7
        %v1074 = vsel %vm556, %v1073, %v1072
        %v1075 = vsel %vm558, %v1073, %v1074
        %v1076 = vrot.slane %v1065, 6
        %v1077 = vsel %vm561, %v1076, %v1075
        %v1078 = vsel %vm563, %v1076, %v1077
        %1079 = vrot.lane.b32.xlu0 %v1078, 16
        %v1080 = vpop.permute.xlu0 %1079
        %1082 = vst.msk [vmem:[#allocation2 + $0x4] sm:$0xf] %vm621, %v1080
        %1083 = vst [vmem:[#allocation1] ss:$2 sm:$0xff] %v495
        %v1084 = vld.sshfl [vmem:[#allocation1 + $0x8] sm:$0xff pattern:$0x75316420]
        %v1085 = vrot.slane %v1084, 6
        %v1086 = vrot.slane %v1084, 7
        %v1087 = vrot.slane %v1084, 1
        %1088 = vrot.lane.b32.xlu0 %v1085, 96
        %v1089 = vpop.permute.xlu0 %1088
        %1090 = vrot.lane.b32.xlu0 %v1086, 96
        %v1091 = vpop.permute.xlu0 %1090
        %1092 = vrot.lane.b32.xlu0 %v1084, 96
        %v1093 = vpop.permute.xlu0 %1092
        %1094 = vrot.lane.b32.xlu0 %v1087, 96
        %v1095 = vpop.permute.xlu0 %1094
        %v1100 = vadd.f32 %v406, %v1089
        %v1101 = vadd.f32 %v435, %v1091
        %v1102 = vadd.f32 %v464, %v1093
        %v1103 = vadd.f32 %v493, %v1095
        %v1104 = vmul.f32 %v1100, %v644
        %v1105 = vmul.f32 %v1101, %v589
        %v1106 = vmul.f32 %v1102, %v515
        %v1107 = vmul.f32 %v1103, %v516
        %v1108 = vadd.f32 %v1104, %v650
        %v1109 = vadd.f32 %v1105, %v595
        %v1110 = vadd.f32 %v1106, %v530
        %v1111 = vadd.f32 %v1107, %v531
        %v1112 = vmax.f32 %v1108, 0.0
        %v1113 = vmax.f32 %v1109, 0.0
        %v1114 = vmax.f32 %v1110, 0.0
        %v1115 = vmax.f32 %v1111, 0.0
        %v1120 = vrot.slane %v1112, 2
        %v1121 = vrot.slane %v1113, 1
        %v1122 = vsel %vm551, %v1121, %v1120
        %v1123 = vsel %vm553, %v1121, %v1122
        %v1124 = vsel %vm556, %v1114, %v1123
        %v1125 = vsel %vm558, %v1114, %v1124
        %v1126 = vrot.slane %v1115, 7
        %v1127 = vsel %vm561, %v1126, %v1125
        %v1128 = vsel %vm563, %v1126, %v1127
        %1129 = vrot.lane.b32.xlu0 %v1128, 32
        %v1130 = vpop.permute.xlu0 %1129
        %1132 = vst.msk [vmem:[#allocation2 + $0x4] sm:$0xf] %vm676, %v1130
        %1133 = vst [vmem:[#allocation1] ss:$2 sm:$0xff] %v495
        %v1134 = vld.sshfl [vmem:[#allocation1 + $0x8] sm:$0xff pattern:$0x75316420]
        %v1135 = vrot.slane %v1134, 5
        %v1136 = vrot.slane %v1134, 6
        %v1137 = vrot.slane %v1134, 7
        %1138 = vrot.lane.b32.xlu0 %v1135, 80
        %v1139 = vpop.permute.xlu0 %1138
        %1140 = vrot.lane.b32.xlu0 %v1136, 80
        %v1141 = vpop.permute.xlu0 %1140
        %1142 = vrot.lane.b32.xlu0 %v1137, 80
        %v1143 = vpop.permute.xlu0 %1142
        %1144 = vrot.lane.b32.xlu0 %v1134, 80
        %v1145 = vpop.permute.xlu0 %1144
        %v1150 = vadd.f32 %v406, %v1139
        %v1151 = vadd.f32 %v435, %v1141
        %v1152 = vadd.f32 %v464, %v1143
        %v1153 = vadd.f32 %v493, %v1145
        %v1154 = vmul.f32 %v1150, %v699
        %v1155 = vmul.f32 %v1151, %v644
        %v1156 = vmul.f32 %v1152, %v589
        %v1157 = vmul.f32 %v1153, %v515
        %v1158 = vadd.f32 %v1154, %v705
        %v1159 = vadd.f32 %v1155, %v650
        %v1160 = vadd.f32 %v1156, %v595
        %v1161 = vadd.f32 %v1157, %v530
        %v1162 = vmax.f32 %v1158, 0.0
        %v1163 = vmax.f32 %v1159, 0.0
        %v1164 = vmax.f32 %v1160, 0.0
        %v1165 = vmax.f32 %v1161, 0.0
        %v1170 = vrot.slane %v1162, 3
        %v1171 = vrot.slane %v1163, 2
        %v1172 = vsel %vm551, %v1171, %v1170
        %v1173 = vsel %vm553, %v1171, %v1172
        %v1174 = vrot.slane %v1164, 1
        %v1175 = vsel %vm556, %v1174, %v1173
        %v1176 = vsel %vm558, %v1174, %v1175
        %v1177 = vsel %vm561, %v1165, %v1176
        %v1178 = vsel %vm563, %v1165, %v1177
        %1179 = vrot.lane.b32.xlu0 %v1178, 48
        %v1180 = vpop.permute.xlu0 %1179
        %1182 = vst.msk [vmem:[#allocation2 + $0x4] sm:$0xf] %vm731, %v1180
        %s1183 = scalar_lea.vmem [#allocation1], 1
        %1184 = vst [vmem:[%s1183] ss:$2 sm:$0xff] %v495
        %v1185 = vld.sshfl [vmem:[#allocation1 + $0x8] sm:$0xff pattern:$0x75316420]
        %v1186 = vrot.slane %v1185, 1
        %v1187 = vrot.slane %v1185, 2
        %v1188 = vrot.slane %v1185, 3
        %1189 = vrot.lane.b32.xlu0 %v1185, 64
        %v1190 = vpop.permute.xlu0 %1189
        %1191 = vrot.lane.b32.xlu0 %v1186, 64
        %v1192 = vpop.permute.xlu0 %1191
        %1193 = vrot.lane.b32.xlu0 %v1187, 64
        %v1194 = vpop.permute.xlu0 %1193
        %1195 = vrot.lane.b32.xlu0 %v1188, 64
        %v1196 = vpop.permute.xlu0 %1195
        %v1201 = vadd.f32 %v406, %v1190
        %v1202 = vadd.f32 %v435, %v1192
        %v1203 = vadd.f32 %v464, %v1194
        %v1204 = vadd.f32 %v493, %v1196
        %v1205 = vmul.f32 %v1201, %v755
        %v1206 = vmul.f32 %v1202, %v699
        %v1207 = vmul.f32 %v1203, %v644
        %v1208 = vmul.f32 %v1204, %v589
        %v1209 = vadd.f32 %v1205, %v761
        %v1210 = vadd.f32 %v1206, %v705
        %v1211 = vadd.f32 %v1207, %v650
        %v1212 = vadd.f32 %v1208, %v595
        %v1213 = vmax.f32 %v1209, 0.0
        %v1214 = vmax.f32 %v1210, 0.0
        %v1215 = vmax.f32 %v1211, 0.0
        %v1216 = vmax.f32 %v1212, 0.0
        %1221 = vst.sshfl [vmem:[#allocation1] sm:$0xff pattern:$0x75316420] %v1213
        %s1222 = scalar_lea.vmem [#allocation1], 1
        %v1223 = vld [vmem:[%s1222] ss:$2 sm:$0xff]
        %1224 = vst.sshfl [vmem:[#allocation1 + $0x10] sm:$0xff pattern:$0x75316420] %v1214
        %s1225 = scalar_lea.vmem [#allocation1], 17
        %v1226 = vld [vmem:[%s1225] ss:$2 sm:$0xff]
        %1227 = vst.sshfl [vmem:[#allocation1 + $0x20] sm:$0xff pattern:$0x75316420] %v1215
        %s1228 = scalar_lea.vmem [#allocation1], 33
        %v1229 = vld [vmem:[%s1228] ss:$2 sm:$0xff]
        %1230 = vst.sshfl [vmem:[#allocation1 + $0x30] sm:$0xff pattern:$0x75316420] %v1216
        %s1231 = scalar_lea.vmem [#allocation1], 49
        %v1232 = vld [vmem:[%s1231] ss:$2 sm:$0xff]
        %v1233 = vrot.slane %v1226, 7
        %v1234 = vsel %vm551, %v1233, %v1223
        %v1235 = vsel %vm553, %v1233, %v1234
        %v1236 = vrot.slane %v1229, 6
        %v1237 = vsel %vm556, %v1236, %v1235
        %v1238 = vsel %vm558, %v1236, %v1237
        %v1239 = vrot.slane %v1232, 5
        %v1240 = vsel %vm561, %v1239, %v1238
        %v1241 = vsel %vm563, %v1239, %v1240
        %1242 = vrot.lane.b32.xlu0 %v1241, 64
        %v1243 = vpop.permute.xlu0 %1242
        %1245 = vst.msk [vmem:[#allocation2 + $0x4] sm:$0xf] %vm799, %v1243
        %1246 = vst [vmem:[#allocation1] ss:$2 sm:$0xff] %v495
        %v1247 = vld.sshfl [vmem:[#allocation1 + $0x8] sm:$0xff pattern:$0x75316420]
        %v1248 = vrot.slane %v1247, 3
        %v1249 = vrot.slane %v1247, 4
        %v1250 = vrot.slane %v1247, 5
        %v1251 = vrot.slane %v1247, 6
        %1252 = vrot.lane.b32.xlu0 %v1248, 48
        %v1253 = vpop.permute.xlu0 %1252
        %1254 = vrot.lane.b32.xlu0 %v1249, 48
        %v1255 = vpop.permute.xlu0 %1254
        %1256 = vrot.lane.b32.xlu0 %v1250, 48
        %v1257 = vpop.permute.xlu0 %1256
        %1258 = vrot.lane.b32.xlu0 %v1251, 48
        %v1259 = vpop.permute.xlu0 %1258
        %v1264 = vadd.f32 %v406, %v1253
        %v1265 = vadd.f32 %v435, %v1255
        %v1266 = vadd.f32 %v464, %v1257
        %v1267 = vadd.f32 %v493, %v1259
        %v1268 = vmul.f32 %v1264, %v518
        %v1269 = vmul.f32 %v1265, %v755
        %v1270 = vmul.f32 %v1266, %v699
        %v1271 = vmul.f32 %v1267, %v644
        %v1272 = vadd.f32 %v1268, %v533
        %v1273 = vadd.f32 %v1269, %v761
        %v1274 = vadd.f32 %v1270, %v705
        %v1275 = vadd.f32 %v1271, %v650
        %v1276 = vmax.f32 %v1272, 0.0
        %v1277 = vmax.f32 %v1273, 0.0
        %v1278 = vmax.f32 %v1274, 0.0
        %v1279 = vmax.f32 %v1275, 0.0
        %1284 = vst.sshfl [vmem:[#allocation1] sm:$0xff pattern:$0x75316420] %v1276
        %s1285 = scalar_lea.vmem [#allocation1], 1
        %v1286 = vld [vmem:[%s1285] ss:$2 sm:$0xff]
        %1287 = vst.sshfl [vmem:[#allocation1 + $0x10] sm:$0xff pattern:$0x75316420] %v1277
        %s1288 = scalar_lea.vmem [#allocation1], 17
        %v1289 = vld [vmem:[%s1288] ss:$2 sm:$0xff]
        %1290 = vst.sshfl [vmem:[#allocation1 + $0x20] sm:$0xff pattern:$0x75316420] %v1278
        %s1291 = scalar_lea.vmem [#allocation1], 33
        %v1292 = vld [vmem:[%s1291] ss:$2 sm:$0xff]
        %1293 = vst.sshfl [vmem:[#allocation1 + $0x30] sm:$0xff pattern:$0x75316420] %v1279
        %s1294 = scalar_lea.vmem [#allocation1], 49
        %v1295 = vld [vmem:[%s1294] ss:$2 sm:$0xff]
        %v1296 = vrot.slane %v1286, 1
        %v1297 = vsel %vm551, %v1289, %v1296
        %v1298 = vsel %vm553, %v1289, %v1297
        %v1299 = vrot.slane %v1292, 7
        %v1300 = vsel %vm556, %v1299, %v1298
        %v1301 = vsel %vm558, %v1299, %v1300
        %v1302 = vrot.slane %v1295, 6
        %v1303 = vsel %vm561, %v1302, %v1301
        %v1304 = vsel %vm563, %v1302, %v1303
        %1305 = vrot.lane.b32.xlu0 %v1304, 80
        %v1306 = vpop.permute.xlu0 %1305
        %1308 = vst.msk [vmem:[#allocation2 + $0x4] sm:$0xf] %vm863, %v1306
        %1309 = vst [vmem:[#allocation1] ss:$2 sm:$0xff] %v495
        %v1310 = vld.sshfl [vmem:[#allocation1 + $0x8] sm:$0xff pattern:$0x75316420]
        %v1311 = vrot.slane %v1310, 2
        %v1312 = vrot.slane %v1310, 3
        %v1313 = vrot.slane %v1310, 4
        %v1314 = vrot.slane %v1310, 5
        %1315 = vrot.lane.b32.xlu0 %v1311, 32
        %v1316 = vpop.permute.xlu0 %1315
        %1317 = vrot.lane.b32.xlu0 %v1312, 32
        %v1318 = vpop.permute.xlu0 %1317
        %1319 = vrot.lane.b32.xlu0 %v1313, 32
        %v1320 = vpop.permute.xlu0 %1319
        %1321 = vrot.lane.b32.xlu0 %v1314, 32
        %v1322 = vpop.permute.xlu0 %1321
        %v1327 = vadd.f32 %v406, %v1316
        %v1328 = vadd.f32 %v435, %v1318
        %v1329 = vadd.f32 %v464, %v1320
        %v1330 = vadd.f32 %v493, %v1322
        %v1331 = vmul.f32 %v1327, %v517
        %v1332 = vmul.f32 %v1328, %v518
        %v1333 = vmul.f32 %v1329, %v755
        %v1334 = vmul.f32 %v1330, %v699
        %v1335 = vadd.f32 %v1331, %v532
        %v1336 = vadd.f32 %v1332, %v533
        %v1337 = vadd.f32 %v1333, %v761
        %v1338 = vadd.f32 %v1334, %v705
        %v1339 = vmax.f32 %v1335, 0.0
        %v1340 = vmax.f32 %v1336, 0.0
        %v1341 = vmax.f32 %v1337, 0.0
        %v1342 = vmax.f32 %v1338, 0.0
        %1347 = vst.sshfl [vmem:[#allocation1] sm:$0xff pattern:$0x75316420] %v1339
        %s1348 = scalar_lea.vmem [#allocation1], 1
        %v1349 = vld [vmem:[%s1348] ss:$2 sm:$0xff]
        %1350 = vst.sshfl [vmem:[#allocation1 + $0x10] sm:$0xff pattern:$0x75316420] %v1340
        %s1351 = scalar_lea.vmem [#allocation1], 17
        %v1352 = vld [vmem:[%s1351] ss:$2 sm:$0xff]
        %1353 = vst.sshfl [vmem:[#allocation1 + $0x20] sm:$0xff pattern:$0x75316420] %v1341
        %s1354 = scalar_lea.vmem [#allocation1], 33
        %v1355 = vld [vmem:[%s1354] ss:$2 sm:$0xff]
        %1356 = vst.sshfl [vmem:[#allocation1 + $0x30] sm:$0xff pattern:$0x75316420] %v1342
        %s1357 = scalar_lea.vmem [#allocation1], 49
        %v1358 = vld [vmem:[%s1357] ss:$2 sm:$0xff]
        %v1359 = vrot.slane %v1349, 2
        %v1360 = vrot.slane %v1352, 1
        %v1361 = vsel %vm551, %v1360, %v1359
        %v1362 = vsel %vm553, %v1360, %v1361
        %v1363 = vsel %vm556, %v1355, %v1362
        %v1364 = vsel %vm558, %v1355, %v1363
        %v1365 = vrot.slane %v1358, 7
        %v1366 = vsel %vm561, %v1365, %v1364
        %v1367 = vsel %vm563, %v1365, %v1366
        %1368 = vrot.lane.b32.xlu0 %v1367, 96
        %v1369 = vpop.permute.xlu0 %1368
        %1371 = vst.msk [vmem:[#allocation2 + $0x4] sm:$0xf] %vm927, %v1369
        %1372 = vst [vmem:[#allocation1] ss:$2 sm:$0xff] %v495
        %v1373 = vld.sshfl [vmem:[#allocation1 + $0x8] sm:$0xff pattern:$0x75316420]
        %v1374 = vrot.slane %v1373, 1
        %v1375 = vrot.slane %v1373, 2
        %v1376 = vrot.slane %v1373, 3
        %v1377 = vrot.slane %v1373, 4
        %1378 = vrot.lane.b32.xlu0 %v1374, 16
        %v1379 = vpop.permute.xlu0 %1378
        %1380 = vrot.lane.b32.xlu0 %v1375, 16
        %v1381 = vpop.permute.xlu0 %1380
        %1382 = vrot.lane.b32.xlu0 %v1376, 16
        %v1383 = vpop.permute.xlu0 %1382
        %1384 = vrot.lane.b32.xlu0 %v1377, 16
        %v1385 = vpop.permute.xlu0 %1384
        %v1390 = vadd.f32 %v406, %v1379
        %v1391 = vadd.f32 %v435, %v1381
        %v1392 = vadd.f32 %v464, %v1383
        %v1393 = vadd.f32 %v493, %v1385
        %v1394 = vmul.f32 %v1390, %v516
        %v1395 = vmul.f32 %v1391, %v517
        %v1396 = vmul.f32 %v1392, %v518
        %v1397 = vmul.f32 %v1393, %v755
        %v1398 = vadd.f32 %v1394, %v531
        %v1399 = vadd.f32 %v1395, %v532
        %v1400 = vadd.f32 %v1396, %v533
        %v1401 = vadd.f32 %v1397, %v761
        %v1402 = vmax.f32 %v1398, 0.0
        %v1403 = vmax.f32 %v1399, 0.0
        %v1404 = vmax.f32 %v1400, 0.0
        %v1405 = vmax.f32 %v1401, 0.0
        %1410 = vst.sshfl [vmem:[#allocation1] sm:$0xff pattern:$0x75316420] %v1402
        %s1411 = scalar_lea.vmem [#allocation1], 1
        %v1412 = vld [vmem:[%s1411] ss:$2 sm:$0xff]
        %1413 = vst.sshfl [vmem:[#allocation1 + $0x10] sm:$0xff pattern:$0x75316420] %v1403
        %s1414 = scalar_lea.vmem [#allocation1], 17
        %v1415 = vld [vmem:[%s1414] ss:$2 sm:$0xff]
        %1416 = vst.sshfl [vmem:[#allocation1 + $0x20] sm:$0xff pattern:$0x75316420] %v1404
        %s1417 = scalar_lea.vmem [#allocation1], 33
        %v1418 = vld [vmem:[%s1417] ss:$2 sm:$0xff]
        %1419 = vst.sshfl [vmem:[#allocation1 + $0x30] sm:$0xff pattern:$0x75316420] %v1405
        %s1420 = scalar_lea.vmem [#allocation1], 49
        %v1421 = vld [vmem:[%s1420] ss:$2 sm:$0xff]
        %v1422 = vrot.slane %v1412, 3
        %v1423 = vrot.slane %v1415, 2
        %v1424 = vsel %vm551, %v1423, %v1422
        %v1425 = vsel %vm553, %v1423, %v1424
        %v1426 = vrot.slane %v1418, 1
        %v1427 = vsel %vm556, %v1426, %v1425
        %v1428 = vsel %vm558, %v1426, %v1427
        %v1429 = vsel %vm561, %v1421, %v1428
        %v1430 = vsel %vm563, %v1421, %v1429
        %1431 = vrot.lane.b32.xlu0 %v1430, 112
        %v1432 = vpop.permute.xlu0 %1431
        %1434 = vst.msk [vmem:[#allocation2 + $0x4] sm:$0xf] %vm991, %v1432
        %v1435 = vld [vmem:[#allocation2] sm:$0xff]
        %1437 = vst [vmem:[#allocation1] ss:$2 sm:$0xff] %v1435
        %v1438 = vld.sshfl [vmem:[#allocation1 + $0x8] sm:$0xff pattern:$0x75316420]
        %1439 = vrot.lane.b32.xlu0 %v1438, 17
        %v1440 = vpop.permute.xlu0 %1439
        %1442 = vst [vmem:[#allocation1] ss:$2 sm:$0xff] %v1435
        %v1443 = vld.sshfl [vmem:[#allocation1] sm:$0xff pattern:$0x75316420]
        %v1444 = vld.sshfl [vmem:[#allocation1 + $0x8] sm:$0xff pattern:$0x75316420]
        %1445 = vrot.lane.b32.xlu0 %v1443, 17
        %v1446 = vpop.permute.xlu0 %1445
        %1447 = vrot.lane.b32.xlu0 %v1444, 17
        %v1448 = vpop.permute.xlu0 %1447
        %vm1449 = vcmask 138240
        %v1450 = vsel %vm1449, %v1446, %v1448
        %v1453 = vsel %vm1449, %v1440, %v1446
        %v1454 = vld [vmem:[%s7] ss:$8 sm:$0x3]
        %v1456 = vperm.slane %v1454, 0
        %v1457 = vperm.slane %v1454, 1
        %v1460 = vmul.f32 %v1453, %v1456
        %v1461 = vmul.f32 %v1450, %v1457
        %v1462 = vld [vmem:[%s6] sm:$0xf]
        %1463 = vst [vmem:[#allocation1] ss:$2 sm:$0xff] %v1435
        %v1464 = vld.sshfl [vmem:[#allocation1 + $0x8] sm:$0xff pattern:$0x75316420]
        %1465 = vrot.lane.b32.xlu0 %v1464, 16
        %v1466 = vpop.permute.xlu0 %1465
        %1468 = vst [vmem:[#allocation1] ss:$2 sm:$0xff] %v1435
        %v1469 = vld.sshfl [vmem:[#allocation1] sm:$0xff pattern:$0x75316420]
        %v1470 = vld.sshfl [vmem:[#allocation1 + $0x8] sm:$0xff pattern:$0x75316420]
        %1471 = vrot.lane.b32.xlu0 %v1469, 16
        %v1472 = vpop.permute.xlu0 %1471
        %1473 = vrot.lane.b32.xlu0 %v1470, 16
        %v1474 = vpop.permute.xlu0 %1473
        %vm1475 = vcmask 130048
        %v1476 = vsel %vm1475, %v1472, %v1474
        %v1479 = vsel %vm1475, %v1466, %v1472
        %s1480 = scalar_lea.vmem %s7, 1
        %v1481 = vld [vmem:[%s1480] ss:$8 sm:$0x3]
        %v1483 = vperm.slane %v1481, 0
        %v1484 = vperm.slane %v1481, 1
        %v1487 = vmul.f32 %v1479, %v1483
        %v1488 = vmul.f32 %v1476, %v1484
        %s1489 = scalar_lea.vmem %s6, 4
        %v1490 = vld [vmem:[%s1489] sm:$0xf]
        %vm1491 = vcmask 31744
        %v1493 = vsel %vm1491, %v1490, 0
        %vm1495 = vcmask 1043456
        %v1497 = vsel %vm1495, %v1487, 0
        %v1500 = vsel %vm1495, %v1488, 0
        %1502 = vmatpush.msra.mxu0 0.0
        %1503 = vmatpush.msra.mxu0 0.0
        %1504 = vmatpush.msra.mxu0 0.0
        %1505 = vmatpush.msra.mxu0 0.0
        %1506 = vmatpush.msra.mxu0 0.0
        %1507 = vmatpush.msra.mxu0 0.0
        %1508 = vmatpush.msra.mxu0 0.0
        %1509 = vmatpush.msra.mxu0 0.0
        %1510 = vmatpush.msra.mxu0 0.0
        %1511 = vmatpush.msra.mxu0 0.0
        %1512 = vmatpush.msra.mxu0 0.0
        %1513 = vmatpush.msra.mxu0 0.0
        %1514 = vmatpush.msra.mxu0 0.0
        %1515 = vmatpush.msra.mxu0 0.0
        %1516 = vmatpush.msra.mxu0 0.0
        %1517 = vmatpush.msra.mxu0 %v1497
        %1518 = vmatmul.f32.gmra.mxu0 %v1493
        %v1519 = vpop.f32.mrf.mxu0
        %v1520 = vadd.f32 0.0, %v1519
        %1521 = vdwg.mxu0
        %1522 = vmatpush.msra.mxu0 0.0
        %1523 = vmatpush.msra.mxu0 0.0
        %1524 = vmatpush.msra.mxu0 0.0
        %1525 = vmatpush.msra.mxu0 0.0
        %1526 = vmatpush.msra.mxu0 0.0
        %1527 = vmatpush.msra.mxu0 0.0
        %1528 = vmatpush.msra.mxu0 0.0
        %1529 = vmatpush.msra.mxu0 0.0
        %1530 = vmatpush.msra.mxu0 0.0
        %1531 = vmatpush.msra.mxu0 0.0
        %1532 = vmatpush.msra.mxu0 0.0
        %1533 = vmatpush.msra.mxu0 0.0
        %1534 = vmatpush.msra.mxu0 0.0
        %1535 = vmatpush.msra.mxu0 0.0
        %1536 = vmatpush.msra.mxu0 0.0
        %1537 = vmatpush.msra.mxu0 %v1500
        %1538 = vmatmul.f32.gmra.mxu0 %v1493
        %v1539 = vpop.f32.mrf.mxu0
        %v1540 = vadd.f32 0.0, %v1539
        %1541 = vdwg.mxu0
        %v1543 = vsel %vm1491, %v1462, 0
        %v1546 = vsel %vm1495, %v1460, 0
        %v1549 = vsel %vm1495, %v1461, 0
        %1551 = vmatpush.msra.mxu0 0.0
        %1552 = vmatpush.msra.mxu0 0.0
        %1553 = vmatpush.msra.mxu0 0.0
        %1554 = vmatpush.msra.mxu0 0.0
        %1555 = vmatpush.msra.mxu0 0.0
        %1556 = vmatpush.msra.mxu0 0.0
        %1557 = vmatpush.msra.mxu0 0.0
        %1558 = vmatpush.msra.mxu0 0.0
        %1559 = vmatpush.msra.mxu0 0.0
        %1560 = vmatpush.msra.mxu0 0.0
        %1561 = vmatpush.msra.mxu0 0.0
        %1562 = vmatpush.msra.mxu0 0.0
        %1563 = vmatpush.msra.mxu0 0.0
        %1564 = vmatpush.msra.mxu0 0.0
        %1565 = vmatpush.msra.mxu0 0.0
        %1566 = vmatpush.msra.mxu0 %v1546
        %1567 = vmatmul.f32.gmra.mxu0 %v1543
        %v1568 = vpop.f32.mrf.mxu0
        %v1569 = vadd.f32 %v1520, %v1568
        %1570 = vdwg.mxu0
        %1571 = vmatpush.msra.mxu0 0.0
        %1572 = vmatpush.msra.mxu0 0.0
        %1573 = vmatpush.msra.mxu0 0.0
        %1574 = vmatpush.msra.mxu0 0.0
        %1575 = vmatpush.msra.mxu0 0.0
        %1576 = vmatpush.msra.mxu0 0.0
        %1577 = vmatpush.msra.mxu0 0.0
        %1578 = vmatpush.msra.mxu0 0.0
        %1579 = vmatpush.msra.mxu0 0.0
        %1580 = vmatpush.msra.mxu0 0.0
        %1581 = vmatpush.msra.mxu0 0.0
        %1582 = vmatpush.msra.mxu0 0.0
        %1583 = vmatpush.msra.mxu0 0.0
        %1584 = vmatpush.msra.mxu0 0.0
        %1585 = vmatpush.msra.mxu0 0.0
        %1586 = vmatpush.msra.mxu0 %v1549
        %1587 = vmatmul.f32.gmra.mxu0 %v1543
        %v1588 = vpop.f32.mrf.mxu0
        %v1589 = vadd.f32 %v1540, %v1588
        %1590 = vdwg.mxu0
        %1591 = vst [vmem:[#allocation1] ss:$2 sm:$0xff] %v1435
        %v1592 = vld.sshfl [vmem:[#allocation1 + $0x8] sm:$0xff pattern:$0x75316420]
        %1593 = vrot.lane.b32.xlu0 %v1592, 15
        %v1594 = vpop.permute.xlu0 %1593
        %1596 = vst [vmem:[#allocation1] ss:$2 sm:$0xff] %v1435
        %v1597 = vld.sshfl [vmem:[#allocation1] sm:$0xff pattern:$0x75316420]
        %v1598 = vld.sshfl [vmem:[#allocation1 + $0x8] sm:$0xff pattern:$0x75316420]
        %1599 = vrot.lane.b32.xlu0 %v1597, 15
        %v1600 = vpop.permute.xlu0 %1599
        %1601 = vrot.lane.b32.xlu0 %v1598, 15
        %v1602 = vpop.permute.xlu0 %1601
        %vm1603 = vcmask 121856
        %v1604 = vsel %vm1603, %v1600, %v1602
        %v1607 = vsel %vm1603, %v1594, %v1600
        %s1608 = scalar_lea.vmem %s7, 2
        %v1609 = vld [vmem:[%s1608] ss:$8 sm:$0x3]
        %v1611 = vperm.slane %v1609, 0
        %v1612 = vperm.slane %v1609, 1
        %v1615 = vmul.f32 %v1607, %v1611
        %v1616 = vmul.f32 %v1604, %v1612
        %s1617 = scalar_lea.vmem %s6, 8
        %v1618 = vld [vmem:[%s1617] sm:$0xf]
        %v1620 = vsel %vm1491, %v1618, 0
        %v1623 = vsel %vm1495, %v1615, 0
        %v1626 = vsel %vm1495, %v1616, 0
        %1628 = vmatpush.msra.mxu0 0.0
        %1629 = vmatpush.msra.mxu0 0.0
        %1630 = vmatpush.msra.mxu0 0.0
        %1631 = vmatpush.msra.mxu0 0.0
        %1632 = vmatpush.msra.mxu0 0.0
        %1633 = vmatpush.msra.mxu0 0.0
        %1634 = vmatpush.msra.mxu0 0.0
        %1635 = vmatpush.msra.mxu0 0.0
        %1636 = vmatpush.msra.mxu0 0.0
        %1637 = vmatpush.msra.mxu0 0.0
        %1638 = vmatpush.msra.mxu0 0.0
        %1639 = vmatpush.msra.mxu0 0.0
        %1640 = vmatpush.msra.mxu0 0.0
        %1641 = vmatpush.msra.mxu0 0.0
        %1642 = vmatpush.msra.mxu0 0.0
        %1643 = vmatpush.msra.mxu0 %v1623
        %1644 = vmatmul.f32.gmra.mxu0 %v1620
        %v1645 = vpop.f32.mrf.mxu0
        %v1646 = vadd.f32 0.0, %v1645
        %1647 = vdwg.mxu0
        %1648 = vmatpush.msra.mxu0 0.0
        %1649 = vmatpush.msra.mxu0 0.0
        %1650 = vmatpush.msra.mxu0 0.0
        %1651 = vmatpush.msra.mxu0 0.0
        %1652 = vmatpush.msra.mxu0 0.0
        %1653 = vmatpush.msra.mxu0 0.0
        %1654 = vmatpush.msra.mxu0 0.0
        %1655 = vmatpush.msra.mxu0 0.0
        %1656 = vmatpush.msra.mxu0 0.0
        %1657 = vmatpush.msra.mxu0 0.0
        %1658 = vmatpush.msra.mxu0 0.0
        %1659 = vmatpush.msra.mxu0 0.0
        %1660 = vmatpush.msra.mxu0 0.0
        %1661 = vmatpush.msra.mxu0 0.0
        %1662 = vmatpush.msra.mxu0 0.0
        %1663 = vmatpush.msra.mxu0 %v1626
        %1664 = vmatmul.f32.gmra.mxu0 %v1620
        %v1665 = vpop.f32.mrf.mxu0
        %v1666 = vadd.f32 0.0, %v1665
        %1667 = vdwg.mxu0
        %v1668 = vadd.f32 %v1569, %v1646
        %v1669 = vadd.f32 %v1589, %v1666
        %1670 = vst [vmem:[#allocation1] ss:$2 sm:$0xff] %v1435
        %v1671 = vld.sshfl [vmem:[#allocation1 + $0x8] sm:$0xff pattern:$0x75316420]
        %1672 = vrot.lane.b32.xlu0 %v1671, 1
        %v1673 = vpop.permute.xlu0 %1672
        %1675 = vst [vmem:[#allocation1] ss:$2 sm:$0xff] %v1435
        %v1676 = vld.sshfl [vmem:[#allocation1] sm:$0xff pattern:$0x75316420]
        %v1677 = vld.sshfl [vmem:[#allocation1 + $0x8] sm:$0xff pattern:$0x75316420]
        %1678 = vrot.lane.b32.xlu0 %v1676, 1
        %v1679 = vpop.permute.xlu0 %1678
        %1680 = vrot.lane.b32.xlu0 %v1677, 1
        %v1681 = vpop.permute.xlu0 %1680
        %vm1682 = vcmask 7168
        %v1683 = vsel %vm1682, %v1679, %v1681
        %v1686 = vsel %vm1682, %v1673, %v1679
        %s1687 = scalar_lea.vmem %s7, 3
        %v1688 = vld [vmem:[%s1687] ss:$8 sm:$0x3]
        %v1690 = vperm.slane %v1688, 0
        %v1691 = vperm.slane %v1688, 1
        %v1694 = vmul.f32 %v1686, %v1690
        %v1695 = vmul.f32 %v1683, %v1691
        %s1696 = scalar_lea.vmem %s6, 12
        %v1697 = vld [vmem:[%s1696] sm:$0xf]
        %v1699 = vsel %vm1491, %v1697, 0
        %v1702 = vsel %vm1495, %v1694, 0
        %v1705 = vsel %vm1495, %v1695, 0
        %1707 = vmatpush.msra.mxu0 0.0
        %1708 = vmatpush.msra.mxu0 0.0
        %1709 = vmatpush.msra.mxu0 0.0
        %1710 = vmatpush.msra.mxu0 0.0
        %1711 = vmatpush.msra.mxu0 0.0
        %1712 = vmatpush.msra.mxu0 0.0
        %1713 = vmatpush.msra.mxu0 0.0
        %1714 = vmatpush.msra.mxu0 0.0
        %1715 = vmatpush.msra.mxu0 0.0
        %1716 = vmatpush.msra.mxu0 0.0
        %1717 = vmatpush.msra.mxu0 0.0
        %1718 = vmatpush.msra.mxu0 0.0
        %1719 = vmatpush.msra.mxu0 0.0
        %1720 = vmatpush.msra.mxu0 0.0
        %1721 = vmatpush.msra.mxu0 0.0
        %1722 = vmatpush.msra.mxu0 %v1702
        %1723 = vmatmul.f32.gmra.mxu0 %v1699
        %v1724 = vpop.f32.mrf.mxu0
        %v1725 = vadd.f32 0.0, %v1724
        %1726 = vdwg.mxu0
        %1727 = vmatpush.msra.mxu0 0.0
        %1728 = vmatpush.msra.mxu0 0.0
        %1729 = vmatpush.msra.mxu0 0.0
        %1730 = vmatpush.msra.mxu0 0.0
        %1731 = vmatpush.msra.mxu0 0.0
        %1732 = vmatpush.msra.mxu0 0.0
        %1733 = vmatpush.msra.mxu0 0.0
        %1734 = vmatpush.msra.mxu0 0.0
        %1735 = vmatpush.msra.mxu0 0.0
        %1736 = vmatpush.msra.mxu0 0.0
        %1737 = vmatpush.msra.mxu0 0.0
        %1738 = vmatpush.msra.mxu0 0.0
        %1739 = vmatpush.msra.mxu0 0.0
        %1740 = vmatpush.msra.mxu0 0.0
        %1741 = vmatpush.msra.mxu0 0.0
        %1742 = vmatpush.msra.mxu0 %v1705
        %1743 = vmatmul.f32.gmra.mxu0 %v1699
        %v1744 = vpop.f32.mrf.mxu0
        %v1745 = vadd.f32 0.0, %v1744
        %1746 = vdwg.mxu0
        %v1747 = vadd.f32 %v1668, %v1725
        %v1748 = vadd.f32 %v1669, %v1745
        %s1749 = scalar_lea.vmem %s6, 16
        %v1750 = vld [vmem:[%s1749] sm:$0xf]
        %1751 = vst [vmem:[#allocation1] ss:$2 sm:$0xff] %v1435
        %v1752 = vld.sshfl [vmem:[#allocation1] sm:$0xff pattern:$0x75316420]
        %v1753 = vld.sshfl [vmem:[#allocation1 + $0x8] sm:$0xff pattern:$0x75316420]
        %v1755 = vsel %vm1491, %v1750, 0
        %v1757 = vsel %vm1495, %v1752, 0
        %v1759 = vsel %vm1495, %v1753, 0
        %1761 = vmatpush.msra.mxu0 0.0
        %1762 = vmatpush.msra.mxu0 0.0
        %1763 = vmatpush.msra.mxu0 0.0
        %1764 = vmatpush.msra.mxu0 0.0
        %1765 = vmatpush.msra.mxu0 0.0
        %1766 = vmatpush.msra.mxu0 0.0
        %1767 = vmatpush.msra.mxu0 0.0
        %1768 = vmatpush.msra.mxu0 0.0
        %1769 = vmatpush.msra.mxu0 0.0
        %1770 = vmatpush.msra.mxu0 0.0
        %1771 = vmatpush.msra.mxu0 0.0
        %1772 = vmatpush.msra.mxu0 0.0
        %1773 = vmatpush.msra.mxu0 0.0
        %1774 = vmatpush.msra.mxu0 0.0
        %1775 = vmatpush.msra.mxu0 0.0
        %1776 = vmatpush.msra.mxu0 %v1757
        %1777 = vmatmul.f32.gmra.mxu0 %v1755
        %v1778 = vpop.f32.mrf.mxu0
        %v1779 = vadd.f32 0.0, %v1778
        %1780 = vdwg.mxu0
        %1781 = vmatpush.msra.mxu0 0.0
        %1782 = vmatpush.msra.mxu0 0.0
        %1783 = vmatpush.msra.mxu0 0.0
        %1784 = vmatpush.msra.mxu0 0.0
        %1785 = vmatpush.msra.mxu0 0.0
        %1786 = vmatpush.msra.mxu0 0.0
        %1787 = vmatpush.msra.mxu0 0.0
        %1788 = vmatpush.msra.mxu0 0.0
        %1789 = vmatpush.msra.mxu0 0.0
        %1790 = vmatpush.msra.mxu0 0.0
        %1791 = vmatpush.msra.mxu0 0.0
        %1792 = vmatpush.msra.mxu0 0.0
        %1793 = vmatpush.msra.mxu0 0.0
        %1794 = vmatpush.msra.mxu0 0.0
        %1795 = vmatpush.msra.mxu0 0.0
        %1796 = vmatpush.msra.mxu0 %v1759
        %1797 = vmatmul.f32.gmra.mxu0 %v1755
        %v1798 = vpop.f32.mrf.mxu0
        %v1799 = vadd.f32 0.0, %v1798
        %1800 = vdwg.mxu0
        %v1801 = vadd.f32 %v1747, %v1779
        %v1802 = vadd.f32 %v1748, %v1799
        %1803 = vst [vmem:[#allocation1] ss:$2 sm:$0xff] %v1435
        %v1804 = vld.sshfl [vmem:[#allocation1] sm:$0xff pattern:$0x75316420]
        %v1805 = vld.sshfl [vmem:[#allocation1 + $0x8] sm:$0xff pattern:$0x75316420]
        %1806 = vrot.lane.b32.xlu0 %v1804, 127
        %v1807 = vpop.permute.xlu0 %1806
        %1808 = vrot.lane.b32.xlu0 %v1805, 127
        %v1809 = vpop.permute.xlu0 %1808
        %vm1810 = vcmask 1039360
        %v1811 = vsel %vm1810, %v1807, %v1809
        %1814 = vst [vmem:[#allocation1] ss:$2 sm:$0xff] %v1435
        %v1815 = vld.sshfl [vmem:[#allocation1] sm:$0xff pattern:$0x75316420]
        %1816 = vrot.lane.b32.xlu0 %v1815, 127
        %v1817 = vpop.permute.xlu0 %1816
        %v1819 = vsel %vm1810, %v1809, %v1817
        %s1820 = scalar_lea.vmem %s7, 5
        %v1821 = vld [vmem:[%s1820] ss:$8 sm:$0x3]
        %v1823 = vperm.slane %v1821, 0
        %v1824 = vperm.slane %v1821, 1
        %v1827 = vmul.f32 %v1811, %v1823
        %v1828 = vmul.f32 %v1819, %v1824
        %s1829 = scalar_lea.vmem %s6, 20
        %v1830 = vld [vmem:[%s1829] sm:$0xf]
        %v1832 = vsel %vm1491, %v1830, 0
        %v1835 = vsel %vm1495, %v1827, 0
        %v1838 = vsel %vm1495, %v1828, 0
        %1840 = vmatpush.msra.mxu0 0.0
        %1841 = vmatpush.msra.mxu0 0.0
        %1842 = vmatpush.msra.mxu0 0.0
        %1843 = vmatpush.msra.mxu0 0.0
        %1844 = vmatpush.msra.mxu0 0.0
        %1845 = vmatpush.msra.mxu0 0.0
        %1846 = vmatpush.msra.mxu0 0.0
        %1847 = vmatpush.msra.mxu0 0.0
        %1848 = vmatpush.msra.mxu0 0.0
        %1849 = vmatpush.msra.mxu0 0.0
        %1850 = vmatpush.msra.mxu0 0.0
        %1851 = vmatpush.msra.mxu0 0.0
        %1852 = vmatpush.msra.mxu0 0.0
        %1853 = vmatpush.msra.mxu0 0.0
        %1854 = vmatpush.msra.mxu0 0.0
        %1855 = vmatpush.msra.mxu0 %v1835
        %1856 = vmatmul.f32.gmra.mxu0 %v1832
        %v1857 = vpop.f32.mrf.mxu0
        %v1858 = vadd.f32 0.0, %v1857
        %1859 = vdwg.mxu0
        %1860 = vmatpush.msra.mxu0 0.0
        %1861 = vmatpush.msra.mxu0 0.0
        %1862 = vmatpush.msra.mxu0 0.0
        %1863 = vmatpush.msra.mxu0 0.0
        %1864 = vmatpush.msra.mxu0 0.0
        %1865 = vmatpush.msra.mxu0 0.0
        %1866 = vmatpush.msra.mxu0 0.0
        %1867 = vmatpush.msra.mxu0 0.0
        %1868 = vmatpush.msra.mxu0 0.0
        %1869 = vmatpush.msra.mxu0 0.0
        %1870 = vmatpush.msra.mxu0 0.0
        %1871 = vmatpush.msra.mxu0 0.0
        %1872 = vmatpush.msra.mxu0 0.0
        %1873 = vmatpush.msra.mxu0 0.0
        %1874 = vmatpush.msra.mxu0 0.0
        %1875 = vmatpush.msra.mxu0 %v1838
        %1876 = vmatmul.f32.gmra.mxu0 %v1832
        %v1877 = vpop.f32.mrf.mxu0
        %v1878 = vadd.f32 0.0, %v1877
        %1879 = vdwg.mxu0
        %v1880 = vadd.f32 %v1801, %v1858
        %v1881 = vadd.f32 %v1802, %v1878
        %1882 = vst [vmem:[#allocation1] ss:$2 sm:$0xff] %v1435
        %v1883 = vld.sshfl [vmem:[#allocation1] sm:$0xff pattern:$0x75316420]
        %v1884 = vld.sshfl [vmem:[#allocation1 + $0x8] sm:$0xff pattern:$0x75316420]
        %1885 = vrot.lane.b32.xlu0 %v1883, 113
        %v1886 = vpop.permute.xlu0 %1885
        %1887 = vrot.lane.b32.xlu0 %v1884, 113
        %v1888 = vpop.permute.xlu0 %1887
        %vm1889 = vcmask 924672
        %v1890 = vsel %vm1889, %v1886, %v1888
        %1893 = vst [vmem:[#allocation1] ss:$2 sm:$0xff] %v1435
        %v1894 = vld.sshfl [vmem:[#allocation1] sm:$0xff pattern:$0x75316420]
        %1895 = vrot.lane.b32.xlu0 %v1894, 113
        %v1896 = vpop.permute.xlu0 %1895
        %v1898 = vsel %vm1889, %v1888, %v1896
        %s1899 = scalar_lea.vmem %s7, 6
        %v1900 = vld [vmem:[%s1899] ss:$8 sm:$0x3]
        %v1902 = vperm.slane %v1900, 0
        %v1903 = vperm.slane %v1900, 1
        %v1906 = vmul.f32 %v1890, %v1902
        %v1907 = vmul.f32 %v1898, %v1903
        %s1908 = scalar_lea.vmem %s6, 24
        %v1909 = vld [vmem:[%s1908] sm:$0xf]
        %v1911 = vsel %vm1491, %v1909, 0
        %v1914 = vsel %vm1495, %v1906, 0
        %v1917 = vsel %vm1495, %v1907, 0
        %1919 = vmatpush.msra.mxu0 0.0
        %1920 = vmatpush.msra.mxu0 0.0
        %1921 = vmatpush.msra.mxu0 0.0
        %1922 = vmatpush.msra.mxu0 0.0
        %1923 = vmatpush.msra.mxu0 0.0
        %1924 = vmatpush.msra.mxu0 0.0
        %1925 = vmatpush.msra.mxu0 0.0
        %1926 = vmatpush.msra.mxu0 0.0
        %1927 = vmatpush.msra.mxu0 0.0
        %1928 = vmatpush.msra.mxu0 0.0
        %1929 = vmatpush.msra.mxu0 0.0
        %1930 = vmatpush.msra.mxu0 0.0
        %1931 = vmatpush.msra.mxu0 0.0
        %1932 = vmatpush.msra.mxu0 0.0
        %1933 = vmatpush.msra.mxu0 0.0
        %1934 = vmatpush.msra.mxu0 %v1914
        %1935 = vmatmul.f32.gmra.mxu0 %v1911
        %v1936 = vpop.f32.mrf.mxu0
        %v1937 = vadd.f32 0.0, %v1936
        %1938 = vdwg.mxu0
        %1939 = vmatpush.msra.mxu0 0.0
        %1940 = vmatpush.msra.mxu0 0.0
        %1941 = vmatpush.msra.mxu0 0.0
        %1942 = vmatpush.msra.mxu0 0.0
        %1943 = vmatpush.msra.mxu0 0.0
        %1944 = vmatpush.msra.mxu0 0.0
        %1945 = vmatpush.msra.mxu0 0.0
        %1946 = vmatpush.msra.mxu0 0.0
        %1947 = vmatpush.msra.mxu0 0.0
        %1948 = vmatpush.msra.mxu0 0.0
        %1949 = vmatpush.msra.mxu0 0.0
        %1950 = vmatpush.msra.mxu0 0.0
        %1951 = vmatpush.msra.mxu0 0.0
        %1952 = vmatpush.msra.mxu0 0.0
        %1953 = vmatpush.msra.mxu0 0.0
        %1954 = vmatpush.msra.mxu0 %v1917
        %1955 = vmatmul.f32.gmra.mxu0 %v1911
        %v1956 = vpop.f32.mrf.mxu0
        %v1957 = vadd.f32 0.0, %v1956
        %1958 = vdwg.mxu0
        %v1959 = vadd.f32 %v1880, %v1937
        %v1960 = vadd.f32 %v1881, %v1957
        %1961 = vst [vmem:[#allocation1] ss:$2 sm:$0xff] %v1435
        %v1962 = vld.sshfl [vmem:[#allocation1] sm:$0xff pattern:$0x75316420]
        %v1963 = vld.sshfl [vmem:[#allocation1 + $0x8] sm:$0xff pattern:$0x75316420]
        %1964 = vrot.lane.b32.xlu0 %v1962, 112
        %v1965 = vpop.permute.xlu0 %1964
        %1966 = vrot.lane.b32.xlu0 %v1963, 112
        %v1967 = vpop.permute.xlu0 %1966
        %vm1968 = vcmask 916480
        %v1969 = vsel %vm1968, %v1965, %v1967
        %1972 = vst [vmem:[#allocation1] ss:$2 sm:$0xff] %v1435
        %v1973 = vld.sshfl [vmem:[#allocation1] sm:$0xff pattern:$0x75316420]
        %1974 = vrot.lane.b32.xlu0 %v1973, 112
        %v1975 = vpop.permute.xlu0 %1974
        %v1977 = vsel %vm1968, %v1967, %v1975
        %s1978 = scalar_lea.vmem %s7, 7
        %v1979 = vld [vmem:[%s1978] ss:$8 sm:$0x3]
        %v1981 = vperm.slane %v1979, 0
        %v1982 = vperm.slane %v1979, 1
        %v1985 = vmul.f32 %v1969, %v1981
        %v1986 = vmul.f32 %v1977, %v1982
        %s1987 = scalar_lea.vmem %s6, 28
        %v1988 = vld [vmem:[%s1987] sm:$0xf]
        %v1990 = vsel %vm1491, %v1988, 0
        %v1993 = vsel %vm1495, %v1985, 0
        %v1996 = vsel %vm1495, %v1986, 0
        %1998 = vmatpush.msra.mxu0 0.0
        %1999 = vmatpush.msra.mxu0 0.0
        %2000 = vmatpush.msra.mxu0 0.0
        %2001 = vmatpush.msra.mxu0 0.0
        %2002 = vmatpush.msra.mxu0 0.0
        %2003 = vmatpush.msra.mxu0 0.0
        %2004 = vmatpush.msra.mxu0 0.0
        %2005 = vmatpush.msra.mxu0 0.0
        %2006 = vmatpush.msra.mxu0 0.0
        %2007 = vmatpush.msra.mxu0 0.0
        %2008 = vmatpush.msra.mxu0 0.0
        %2009 = vmatpush.msra.mxu0 0.0
        %2010 = vmatpush.msra.mxu0 0.0
        %2011 = vmatpush.msra.mxu0 0.0
        %2012 = vmatpush.msra.mxu0 0.0
        %2013 = vmatpush.msra.mxu0 %v1993
        %2014 = vmatmul.f32.gmra.mxu0 %v1990
        %v2015 = vpop.f32.mrf.mxu0
        %v2016 = vadd.f32 0.0, %v2015
        %2017 = vdwg.mxu0
        %2018 = vmatpush.msra.mxu0 0.0
        %2019 = vmatpush.msra.mxu0 0.0
        %2020 = vmatpush.msra.mxu0 0.0
        %2021 = vmatpush.msra.mxu0 0.0
        %2022 = vmatpush.msra.mxu0 0.0
        %2023 = vmatpush.msra.mxu0 0.0
        %2024 = vmatpush.msra.mxu0 0.0
        %2025 = vmatpush.msra.mxu0 0.0
        %2026 = vmatpush.msra.mxu0 0.0
        %2027 = vmatpush.msra.mxu0 0.0
        %2028 = vmatpush.msra.mxu0 0.0
        %2029 = vmatpush.msra.mxu0 0.0
        %2030 = vmatpush.msra.mxu0 0.0
        %2031 = vmatpush.msra.mxu0 0.0
        %2032 = vmatpush.msra.mxu0 0.0
        %2033 = vmatpush.msra.mxu0 %v1996
        %2034 = vmatmul.f32.gmra.mxu0 %v1990
        %v2035 = vpop.f32.mrf.mxu0
        %v2036 = vadd.f32 0.0, %v2035
        %2037 = vdwg.mxu0
        %v2038 = vadd.f32 %v1959, %v2016
        %v2039 = vadd.f32 %v1960, %v2036
        %2040 = vst [vmem:[#allocation1] ss:$2 sm:$0xff] %v1435
        %v2041 = vld.sshfl [vmem:[#allocation1] sm:$0xff pattern:$0x75316420]
        %v2042 = vld.sshfl [vmem:[#allocation1 + $0x8] sm:$0xff pattern:$0x75316420]
        %2043 = vrot.lane.b32.xlu0 %v2041, 111
        %v2044 = vpop.permute.xlu0 %2043
        %2045 = vrot.lane.b32.xlu0 %v2042, 111
        %v2046 = vpop.permute.xlu0 %2045
        %vm2047 = vcmask 908288
        %v2048 = vsel %vm2047, %v2044, %v2046
        %2051 = vst [vmem:[#allocation1] ss:$2 sm:$0xff] %v1435
        %v2052 = vld.sshfl [vmem:[#allocation1] sm:$0xff pattern:$0x75316420]
        %2053 = vrot.lane.b32.xlu0 %v2052, 111
        %v2054 = vpop.permute.xlu0 %2053
        %v2056 = vsel %vm2047, %v2046, %v2054
        %s2057 = scalar_lea.vmem %s7, 16
        %v2058 = vld [vmem:[%s2057] ss:$8 sm:$0x3]
        %v2060 = vperm.slane %v2058, 0
        %v2061 = vperm.slane %v2058, 1
        %v2064 = vmul.f32 %v2048, %v2060
        %v2065 = vmul.f32 %v2056, %v2061
        %s2066 = scalar_lea.vmem %s6, 32
        %v2067 = vld [vmem:[%s2066] sm:$0xf]
        %v2069 = vsel %vm1491, %v2067, 0
        %v2072 = vsel %vm1495, %v2064, 0
        %v2075 = vsel %vm1495, %v2065, 0
        %2077 = vmatpush.msra.mxu0 0.0
        %2078 = vmatpush.msra.mxu0 0.0
        %2079 = vmatpush.msra.mxu0 0.0
        %2080 = vmatpush.msra.mxu0 0.0
        %2081 = vmatpush.msra.mxu0 0.0
        %2082 = vmatpush.msra.mxu0 0.0
        %2083 = vmatpush.msra.mxu0 0.0
        %2084 = vmatpush.msra.mxu0 0.0
        %2085 = vmatpush.msra.mxu0 0.0
        %2086 = vmatpush.msra.mxu0 0.0
        %2087 = vmatpush.msra.mxu0 0.0
        %2088 = vmatpush.msra.mxu0 0.0
        %2089 = vmatpush.msra.mxu0 0.0
        %2090 = vmatpush.msra.mxu0 0.0
        %2091 = vmatpush.msra.mxu0 0.0
        %2092 = vmatpush.msra.mxu0 %v2072
        %2093 = vmatmul.f32.gmra.mxu0 %v2069
        %v2094 = vpop.f32.mrf.mxu0
        %v2095 = vadd.f32 0.0, %v2094
        %2096 = vdwg.mxu0
        %2097 = vmatpush.msra.mxu0 0.0
        %2098 = vmatpush.msra.mxu0 0.0
        %2099 = vmatpush.msra.mxu0 0.0
        %2100 = vmatpush.msra.mxu0 0.0
        %2101 = vmatpush.msra.mxu0 0.0
        %2102 = vmatpush.msra.mxu0 0.0
        %2103 = vmatpush.msra.mxu0 0.0
        %2104 = vmatpush.msra.mxu0 0.0
        %2105 = vmatpush.msra.mxu0 0.0
        %2106 = vmatpush.msra.mxu0 0.0
        %2107 = vmatpush.msra.mxu0 0.0
        %2108 = vmatpush.msra.mxu0 0.0
        %2109 = vmatpush.msra.mxu0 0.0
        %2110 = vmatpush.msra.mxu0 0.0
        %2111 = vmatpush.msra.mxu0 0.0
        %2112 = vmatpush.msra.mxu0 %v2075
        %2113 = vmatmul.f32.gmra.mxu0 %v2069
        %v2114 = vpop.f32.mrf.mxu0
        %v2115 = vadd.f32 0.0, %v2114
        %2116 = vdwg.mxu0
        %v2117 = vadd.f32 %v2038, %v2095
        %v2118 = vadd.f32 %v2039, %v2115
        %v2121 = vrot.slane %v2118, 4
        %v2122 = vsel %vm1495, %v2117, %v2121
        %2124 = vst [vmem:[%s313] sm:$0xff] %v2122
        %s2125 = sand.u32 %s208, 1
        %s2126 = scalar_lea.sflag [#allocation4], %s2125
        %s2127 = sand.u32 %s208, 1
        %s2128 = smul.addr %s2127, 8
        %s2129 = scalar_lea.vmem [#allocation3], %s2128
        // Predicated region
        $region53: #{tpu_custom_call.1} parent=51 // pred_check
          %p2130 = pneg %p218
        $region54: #{tpu_custom_call.1} parent=51 // pred_check_branch
          %2132 = sbr.rel (%p2130) target = $region56
        $region55: #{tpu_custom_call.1} parent=51 // pred_region
          %2134 = vsyncadd %s2126, 0
          %s2135 = smul.addr %s22, 2
          %s2136 = smul.addr %s2135, 4
          %s2137 = scalar_lea.hbm %s8, %s2136
          %s2139 = sshll.u32 %s2129, 4
          %s2140 = int_to_ptr.vmem [resolvable:$true] %s2139
          %s2141 = sshll.u32 %s2137, 4
          %s2142 = int_to_ptr.hbm [resolvable:$true] %s2141
          %2144 = dma.vmem_to_hbm [thread:$0]  %s2140, 128, %s2142, %s2126
        $region56: #{tpu_custom_call.1} parent=51 // pred_fallthru
          _
      $region52: #{tpu_custom_call.1} parent=5 // pred_fallthru
        _
      %p2145 = scmp.le.s32.totalorder 2, %s17
      // Predicated region
      $region57: #{tpu_custom_call.1} parent=5 // pred_check
        %p2146 = pneg %p2145
      $region58: #{tpu_custom_call.1} parent=5 // pred_check_branch
        %2148 = sbr.rel (%p2146) target = $region60
      $region59: #{tpu_custom_call.1} parent=5 // pred_region
        %s2149 = ssub.s32 %s17, 2
        // Predicated region
        $region61: #{tpu_custom_call.1} parent=59 // pred_check
          %p2150 = pneg %p224
        $region62: #{tpu_custom_call.1} parent=59 // pred_check_branch
          %2152 = sbr.rel (%p2150) target = $region64
        $region63: #{tpu_custom_call.1} parent=59 // pred_region
          %s2153 = sand.u32 %s209, 1
          %s2154 = scalar_lea.sflag [#allocation4], %s2153
          %s2155 = sand.u32 %s209, 1
          %s2156 = smul.addr %s2155, 8
          %s2157 = scalar_lea.vmem [#allocation3], %s2156
          %2159 = dma.done %s2154, 128
        $region64: #{tpu_custom_call.1} parent=59 // pred_fallthru
          _
      $region60: #{tpu_custom_call.1} parent=5 // pred_fallthru
        _
    $region6: #{tpu_custom_call.1} parent=1 // loop_footer
      %s21 = sadd.s32 1, %s17
    $region7: #{tpu_custom_call.1} parent=1 // loop_footer_branch
      %16 = sbr.rel target = $region3
    $region8: #{tpu_custom_call.1} parent=1 // loop_exit
      _
    %2160 = vsyncpa [#allocation4], 1
    %s2161 = scalar_lea.sflag [#allocation4], 1
    %2162 = vsyncpa %s2161, 1

</llo_original>
